<compile_context>
chip_gen: v5e
topology: v5e:2x2
jax: 0.10.0
libtpu: 0.0.40
codegen_flags: <defaults>
</compile_context>

<pallas_src>
import jax
import jax.numpy as jnp
from jax.experimental import pallas as pl
from jax.experimental.pallas import tpu as pltpu

# Sizes implied by the module: x.view(-1, 196) forces in_size = 196 (14x14).
IN_SIZE = 196
H1 = 64
H2 = 32
MV = 16
MAX_TB = 512          # rows per grid step cap (tiles stay well under VMEM)


def _round_up(n, m):
    return ((n + m - 1) // m) * m


def _choose_tb(batch, max_tb=MAX_TB):
    """Pick the batch tile: large, minimal padding, even grid for v7x."""
    b8 = _round_up(max(batch, 1), 8)
    if b8 <= 16:                      # tiny batch: one step is plenty
        return b8
    n_steps = max(2, -(-b8 // max_tb))
    if n_steps % 2:                   # even grid -> both v7x TensorCores busy
        n_steps += 1
    return _round_up(-(-b8 // n_steps), 8)


def _vae_fwd_kernel(
    x_ref,
    w_e1, b_e1,
    w_e2, b_e2,
    w_mv, b_mv,          # fused fc_mu | fc_var
    w_d1, b_d1,
    w_d2, b_d2,
    w_d3, b_d3,
    eps_ref,
    recon_ref, mu_ref, lvar_ref,
):
    cd = w_e1.dtype                      # matmul compute dtype (bf16)

    # x arrives as f32; cast in-kernel (saves a wrapper HBM cast pass).
    x = x_ref[...].astype(cd)

    # ---- encoder ----
    h = jnp.dot(x, w_e1[...], preferred_element_type=jnp.float32) + b_e1[...]
    h = jnp.maximum(h, 0.0)
    h = jnp.dot(h.astype(cd), w_e2[...],
                preferred_element_type=jnp.float32) + b_e2[...]
    h = jnp.maximum(h, 0.0)

    # fused mu | lvar : single (H2, 2*MV) matmul
    mulvar = jnp.dot(h.astype(cd), w_mv[...],
                     preferred_element_type=jnp.float32) + b_mv[...]
    mu = mulvar[:, :MV]
    lvar = mulvar[:, MV:]

    # ---- reparameterization: z = mu + exp(0.5*lvar) * eps (all f32) ----
    z = mu + jnp.exp(0.5 * lvar) * eps_ref[...]

    # ---- decoder ----
    d = jnp.dot(z.astype(cd), w_d1[...],
                preferred_element_type=jnp.float32) + b_d1[...]
    d = jnp.maximum(d, 0.0)
    d = jnp.dot(d.astype(cd), w_d2[...],
                preferred_element_type=jnp.float32) + b_d2[...]
    d = jnp.maximum(d, 0.0)
    logits = jnp.dot(d.astype(cd), w_d3[...],
                     preferred_element_type=jnp.float32) + b_d3[...]

    # sigmoid on exactly 196 columns (no padded-column EUP work);
    # reciprocal routed to the EUP via approx vrcp.  Stored in bf16.
    recon_ref[...] = pl.reciprocal(1.0 + jnp.exp(-logits),
                                   approx=True).astype(recon_ref.dtype)
    mu_ref[...] = mu
    lvar_ref[...] = lvar


def prepare_params(params, compute_dtype=jnp.bfloat16):
    """One-time prep: fuse fc_mu|fc_var, cast weights to bf16, biases f32."""
    cd = compute_dtype
    return {
        "w_e1": params["w_e1"].astype(cd), "b_e1": params["b_e1"].astype(jnp.float32),
        "w_e2": params["w_e2"].astype(cd), "b_e2": params["b_e2"].astype(jnp.float32),
        "w_mv": jnp.concatenate([params["w_mu"], params["w_var"]], axis=1).astype(cd),
        "b_mv": jnp.concatenate([params["b_mu"], params["b_var"]], axis=1).astype(jnp.float32),
        "w_d1": params["w_d1"].astype(cd), "b_d1": params["b_d1"].astype(jnp.float32),
        "w_d2": params["w_d2"].astype(cd), "b_d2": params["b_d2"].astype(jnp.float32),
        "w_d3": params["w_d3"].astype(cd), "b_d3": params["b_d3"].astype(jnp.float32),
    }


def var_aenc_forward(x, prepared, eps, *, tb=None, recon_dtype=jnp.bfloat16):
    """Pallas implementation of var_aenc.forward.

    x        : any shape with prod(shape) % 196 == 0 (flattened to (-1, 196)), f32
    prepared : output of prepare_params (call once, outside the hot path)
    eps      : (B, MV) standard-normal noise (matches torch.randn_like(std))
    returns  : (reconstruction (B, 196) bf16, mu (B, MV) f32, lvar (B, MV) f32)
    """
    x2 = jnp.reshape(x, (-1, IN_SIZE))          # stays f32; cast happens in-kernel
    B = x2.shape[0]

    TB = tb if tb is not None else _choose_tb(B)
    B_pad = _round_up(B, TB)
    if B_pad != B:
        x2 = jnp.pad(x2, ((0, B_pad - B), (0, 0)))
        eps_p = jnp.pad(eps.astype(jnp.float32), ((0, B_pad - B), (0, 0)))
    else:
        eps_p = eps.astype(jnp.float32)

    operands = (
        x2,
        prepared["w_e1"], prepared["b_e1"],
        prepared["w_e2"], prepared["b_e2"],
        prepared["w_mv"], prepared["b_mv"],
        prepared["w_d1"], prepared["b_d1"],
        prepared["w_d2"], prepared["b_d2"],
        prepared["w_d3"], prepared["b_d3"],
        eps_p,
    )

    def row_block(f):
        # batch-tiled (sublane) block, full feature (lane) width
        return pl.BlockSpec((TB, f), lambda i: (i, 0))

    def resident(shape):
        # constant block index -> fetched once, stays VMEM-resident across grid
        return pl.BlockSpec(shape, lambda i: tuple(0 for _ in shape))

    in_specs = [row_block(IN_SIZE)]                              # x (f32)
    in_specs += [resident(op.shape) for op in operands[1:-1]]    # weights/biases
    in_specs += [row_block(MV)]                                  # eps (f32)

    out_specs = (
        row_block(IN_SIZE),    # recon, stored 196-wide directly (no pad, no slice)
        row_block(MV),         # mu
        row_block(MV),         # lvar
    )
    out_shape = (
        jax.ShapeDtypeStruct((B_pad, IN_SIZE), recon_dtype),
        jax.ShapeDtypeStruct((B_pad, MV), jnp.float32),
        jax.ShapeDtypeStruct((B_pad, MV), jnp.float32),
    )

    # advisory cost estimate so XLA schedules the custom call sensibly
    flops = 2 * B_pad * (IN_SIZE * H1 + H1 * H2 + H2 * 2 * MV
                         + MV * H2 + H2 * H1 + H1 * IN_SIZE)
    transcendentals = B_pad * (MV + 2 * IN_SIZE)
    in_bytes = sum(int(op.size) * op.dtype.itemsize for op in operands)
    out_bytes = (B_pad * IN_SIZE * jnp.dtype(recon_dtype).itemsize
                 + 2 * B_pad * MV * 4)
    cost = pl.CostEstimate(flops=flops, transcendentals=transcendentals,
                           bytes_accessed=in_bytes + out_bytes)

    recon, mu, lvar = pl.pallas_call(
        _vae_fwd_kernel,
        out_shape=out_shape,
        grid=(B_pad // TB,),
        in_specs=in_specs,
        out_specs=out_specs,
        compiler_params=pltpu.CompilerParams(
            dimension_semantics=("parallel",)),   # shard batch across TCs (v7x)
        cost_estimate=cost,
    )(*operands)

    if B_pad != B:   # only slice when the batch really had to be padded
        recon, mu, lvar = recon[:B], mu[:B], lvar[:B]
    return recon, mu, lvar


def _init_linear(key, fan_in, fan_out):
    # Mimic torch.nn.Linear default init: U(-1/sqrt(fan_in), 1/sqrt(fan_in)).
    kw, kb = jax.random.split(key)
    bound = 1.0 / jnp.sqrt(jnp.float32(fan_in))
    # Stored pre-transposed as (in, out) so the kernel does x @ W.
    w = jax.random.uniform(kw, (fan_in, fan_out), jnp.float32, -bound, bound)
    b = jax.random.uniform(kb, (1, fan_out), jnp.float32, -bound, bound)
    return w, b


def init_params(key):
    keys = jax.random.split(key, 7)
    p = {}
    p["w_e1"], p["b_e1"] = _init_linear(keys[0], IN_SIZE, H1)
    p["w_e2"], p["b_e2"] = _init_linear(keys[1], H1, H2)
    p["w_mu"], p["b_mu"] = _init_linear(keys[2], H2, MV)
    p["w_var"], p["b_var"] = _init_linear(keys[3], H2, MV)
    p["w_d1"], p["b_d1"] = _init_linear(keys[4], MV, H2)
    p["w_d2"], p["b_d2"] = _init_linear(keys[5], H2, H1)
    p["w_d3"], p["b_d3"] = _init_linear(keys[6], H1, IN_SIZE)
    return p


def _reference_forward(x, params, eps, compute_dtype=jnp.bfloat16):
    # Plain-JAX reference with the same bf16-into-matmul / f32-elementwise policy.
    def dot(a, w):
        return jnp.dot(a.astype(compute_dtype), w.astype(compute_dtype),
                       preferred_element_type=jnp.float32)

    x2 = jnp.reshape(x, (-1, IN_SIZE)).astype(jnp.float32)
    h = jax.nn.relu(dot(x2, params["w_e1"]) + params["b_e1"])
    h = jax.nn.relu(dot(h, params["w_e2"]) + params["b_e2"])
    mu = dot(h, params["w_mu"]) + params["b_mu"]
    lvar = dot(h, params["w_var"]) + params["b_var"]
    z = mu + jnp.exp(0.5 * lvar) * eps.astype(jnp.float32)
    d = jax.nn.relu(dot(z, params["w_d1"]) + params["b_d1"])
    d = jax.nn.relu(dot(d, params["w_d2"]) + params["b_d2"])
    return jax.nn.sigmoid(dot(d, params["w_d3"]) + params["b_d3"]), mu, lvar


if __name__ == "__main__":
    key = jax.random.PRNGKey(0)
    k_x, k_p, k_eps = jax.random.split(key, 3)

    # Small grayscale-image-like input: (B, 1, 14, 14) -> view(-1, 196).
    # B=256 -> TB=128, grid=(2,): no batch padding, no output slices,
    # even grid (both v7x TensorCores used).
    BATCH = 256
    x = jax.random.uniform(k_x, (BATCH, 1, 14, 14), jnp.float32)
    params = init_params(k_p)
    # eps is the randn_like(std) noise; drawn outside the kernel for determinism.
    # TODO(synk): could use pltpu.prng_seed/prng_random_bits to draw eps in-kernel.
    eps = jax.random.normal(k_eps, (BATCH, MV), jnp.float32)

    prepared = prepare_params(params)          # hoisted: runs once, not per call
    fwd = jax.jit(var_aenc_forward)

    recon, mu, lvar = fwd(x, prepared, eps)
    jax.block_until_ready((recon, mu, lvar))

    # Sanity check against the plain-JAX reference (same bf16 matmul policy;
    # extra slack for the bf16 recon store and the approx-EUP reciprocal).
    r_ref, mu_ref, lvar_ref = _reference_forward(x, params, eps)
    assert recon.shape == (BATCH, IN_SIZE) and recon.dtype == jnp.bfloat16
    assert mu.shape == (BATCH, MV) and lvar.shape == (BATCH, MV)
    assert jnp.allclose(mu, mu_ref, atol=2e-3, rtol=2e-3)
    assert jnp.allclose(lvar, lvar_ref, atol=2e-3, rtol=2e-3)
    assert jnp.allclose(recon.astype(jnp.float32), r_ref, atol=1e-2, rtol=2e-2)

    # Ragged-batch path (B not a multiple of the tile): B=200 -> TB=104, grid=(2,),
    # 8 padded rows (4% waste) which are sliced away on return.
    B2 = 200
    r2, m2, l2 = fwd(x[:B2], prepared, eps[:B2])
    jax.block_until_ready((r2, m2, l2))
    assert r2.shape == (B2, IN_SIZE) and m2.shape == (B2, MV) and l2.shape == (B2, MV)
    assert jnp.allclose(m2, mu_ref[:B2], atol=2e-3, rtol=2e-3)
    assert jnp.allclose(l2, lvar_ref[:B2], atol=2e-3, rtol=2e-3)

    print("KERNEL_OK")
</pallas_src>

<mosaic_0001>
module attributes {stable_mosaic.version = 11 : i64} {
  func.func @_vae_fwd_kernel(%arg0: i32, %arg1: memref<128x196xf32, #tpu.memory_space<vmem>>, %arg2: memref<196x64xbf16, #tpu.memory_space<vmem>>, %arg3: memref<1x64xf32, #tpu.memory_space<vmem>>, %arg4: memref<64x32xbf16, #tpu.memory_space<vmem>>, %arg5: memref<1x32xf32, #tpu.memory_space<vmem>>, %arg6: memref<32x32xbf16, #tpu.memory_space<vmem>>, %arg7: memref<1x32xf32, #tpu.memory_space<vmem>>, %arg8: memref<16x32xbf16, #tpu.memory_space<vmem>>, %arg9: memref<1x32xf32, #tpu.memory_space<vmem>>, %arg10: memref<32x64xbf16, #tpu.memory_space<vmem>>, %arg11: memref<1x64xf32, #tpu.memory_space<vmem>>, %arg12: memref<64x196xbf16, #tpu.memory_space<vmem>>, %arg13: memref<1x196xf32, #tpu.memory_space<vmem>>, %arg14: memref<128x16xf32, #tpu.memory_space<vmem>>, %arg15: memref<128x196xbf16, #tpu.memory_space<vmem>>, %arg16: memref<128x16xf32, #tpu.memory_space<vmem>>, %arg17: memref<128x16xf32, #tpu.memory_space<vmem>>) attributes {dimension_semantics = [#tpu.dimension_semantics<parallel>], iteration_bounds = array<i64: 2>, scalar_prefetch = 0 : i64, scratch_operands = 0 : i64, tpu.core_type = #tpu.core_type<tc>, window_params = [{transform_indices = @transform_0, window_bounds = array<i64: 128, 196>}, {pipeline_mode = #tpu.pipeline_mode<synchronous>, transform_indices = @transform_1, window_bounds = array<i64: 196, 64>}, {pipeline_mode = #tpu.pipeline_mode<synchronous>, transform_indices = @transform_2, window_bounds = array<i64: 1, 64>}, {pipeline_mode = #tpu.pipeline_mode<synchronous>, transform_indices = @transform_3, window_bounds = array<i64: 64, 32>}, {pipeline_mode = #tpu.pipeline_mode<synchronous>, transform_indices = @transform_4, window_bounds = array<i64: 1, 32>}, {pipeline_mode = #tpu.pipeline_mode<synchronous>, transform_indices = @transform_5, window_bounds = array<i64: 32, 32>}, {pipeline_mode = #tpu.pipeline_mode<synchronous>, transform_indices = @transform_6, window_bounds = array<i64: 1, 32>}, {pipeline_mode = #tpu.pipeline_mode<synchronous>, transform_indices = @transform_7, window_bounds = array<i64: 16, 32>}, {pipeline_mode = #tpu.pipeline_mode<synchronous>, transform_indices = @transform_8, window_bounds = array<i64: 1, 32>}, {pipeline_mode = #tpu.pipeline_mode<synchronous>, transform_indices = @transform_9, window_bounds = array<i64: 32, 64>}, {pipeline_mode = #tpu.pipeline_mode<synchronous>, transform_indices = @transform_10, window_bounds = array<i64: 1, 64>}, {pipeline_mode = #tpu.pipeline_mode<synchronous>, transform_indices = @transform_11, window_bounds = array<i64: 64, 196>}, {pipeline_mode = #tpu.pipeline_mode<synchronous>, transform_indices = @transform_12, window_bounds = array<i64: 1, 196>}, {transform_indices = @transform_13, window_bounds = array<i64: 128, 16>}, {transform_indices = @transform_14, window_bounds = array<i64: 128, 196>}, {transform_indices = @transform_15, window_bounds = array<i64: 128, 16>}, {transform_indices = @transform_16, window_bounds = array<i64: 128, 16>}]} {
    %c0 = arith.constant 0 : index
    %c0_0 = arith.constant 0 : index
    %0 = vector.load %arg1[%c0, %c0_0] : memref<128x196xf32, #tpu.memory_space<vmem>>, vector<128x196xf32>
    %1 = arith.truncf %0 : vector<128x196xf32> to vector<128x196xbf16>
    %c0_1 = arith.constant 0 : index
    %c0_2 = arith.constant 0 : index
    %2 = vector.load %arg2[%c0_1, %c0_2] : memref<196x64xbf16, #tpu.memory_space<vmem>>, vector<196x64xbf16>
    %cst = arith.constant dense<0.000000e+00> : vector<128x64xf32>
    %3 = tpu.matmul %1, %2, %cst {dimension_numbers = #tpu.dot_dimension_numbers<[1], [0], [0], [1], [0, 0, 1, 1], [], []>} : vector<128x196xbf16>, vector<196x64xbf16>, vector<128x64xf32> -> vector<128x64xf32>
    %c0_3 = arith.constant 0 : index
    %c0_4 = arith.constant 0 : index
    %4 = vector.load %arg3[%c0_3, %c0_4] : memref<1x64xf32, #tpu.memory_space<vmem>>, vector<1x64xf32>
    %5 = vector.broadcast %4 : vector<1x64xf32> to vector<128x64xf32>
    %6 = arith.addf %3, %5 : vector<128x64xf32>
    %cst_5 = arith.constant 0.000000e+00 : f32
    %7 = vector.broadcast %cst_5 : f32 to vector<128x64xf32>
    %8 = arith.maximumf %6, %7 : vector<128x64xf32>
    %9 = arith.truncf %8 : vector<128x64xf32> to vector<128x64xbf16>
    %c0_6 = arith.constant 0 : index
    %c0_7 = arith.constant 0 : index
    %10 = vector.load %arg4[%c0_6, %c0_7] : memref<64x32xbf16, #tpu.memory_space<vmem>>, vector<64x32xbf16>
    %cst_8 = arith.constant dense<0.000000e+00> : vector<128x32xf32>
    %11 = tpu.matmul %9, %10, %cst_8 {dimension_numbers = #tpu.dot_dimension_numbers<[1], [0], [0], [1], [0, 0, 1, 1], [], []>} : vector<128x64xbf16>, vector<64x32xbf16>, vector<128x32xf32> -> vector<128x32xf32>
    %c0_9 = arith.constant 0 : index
    %c0_10 = arith.constant 0 : index
    %12 = vector.load %arg5[%c0_9, %c0_10] : memref<1x32xf32, #tpu.memory_space<vmem>>, vector<1x32xf32>
    %13 = vector.broadcast %12 : vector<1x32xf32> to vector<128x32xf32>
    %14 = arith.addf %11, %13 : vector<128x32xf32>
    %cst_11 = arith.constant 0.000000e+00 : f32
    %15 = vector.broadcast %cst_11 : f32 to vector<128x32xf32>
    %16 = arith.maximumf %14, %15 : vector<128x32xf32>
    %17 = arith.truncf %16 : vector<128x32xf32> to vector<128x32xbf16>
    %c0_12 = arith.constant 0 : index
    %c0_13 = arith.constant 0 : index
    %18 = vector.load %arg6[%c0_12, %c0_13] : memref<32x32xbf16, #tpu.memory_space<vmem>>, vector<32x32xbf16>
    %cst_14 = arith.constant dense<0.000000e+00> : vector<128x32xf32>
    %19 = tpu.matmul %17, %18, %cst_14 {dimension_numbers = #tpu.dot_dimension_numbers<[1], [0], [0], [1], [0, 0, 1, 1], [], []>} : vector<128x32xbf16>, vector<32x32xbf16>, vector<128x32xf32> -> vector<128x32xf32>
    %c0_15 = arith.constant 0 : index
    %c0_16 = arith.constant 0 : index
    %20 = vector.load %arg7[%c0_15, %c0_16] : memref<1x32xf32, #tpu.memory_space<vmem>>, vector<1x32xf32>
    %21 = vector.broadcast %20 : vector<1x32xf32> to vector<128x32xf32>
    %22 = arith.addf %19, %21 : vector<128x32xf32>
    %23 = vector.extract_strided_slice %22 {offsets = [0, 0], sizes = [128, 16], strides = [1, 1]} : vector<128x32xf32> to vector<128x16xf32>
    %24 = vector.extract_strided_slice %22 {offsets = [0, 16], sizes = [128, 16], strides = [1, 1]} : vector<128x32xf32> to vector<128x16xf32>
    %cst_17 = arith.constant 5.000000e-01 : f32
    %25 = vector.broadcast %cst_17 : f32 to vector<128x16xf32>
    %26 = arith.mulf %25, %24 : vector<128x16xf32>
    %27 = math.exp %26 : vector<128x16xf32>
    %c0_18 = arith.constant 0 : index
    %c0_19 = arith.constant 0 : index
    %28 = vector.load %arg14[%c0_18, %c0_19] : memref<128x16xf32, #tpu.memory_space<vmem>>, vector<128x16xf32>
    %29 = arith.mulf %27, %28 : vector<128x16xf32>
    %30 = arith.addf %23, %29 : vector<128x16xf32>
    %31 = arith.truncf %30 : vector<128x16xf32> to vector<128x16xbf16>
    %c0_20 = arith.constant 0 : index
    %c0_21 = arith.constant 0 : index
    %32 = vector.load %arg8[%c0_20, %c0_21] : memref<16x32xbf16, #tpu.memory_space<vmem>>, vector<16x32xbf16>
    %cst_22 = arith.constant dense<0.000000e+00> : vector<128x32xf32>
    %33 = tpu.matmul %31, %32, %cst_22 {dimension_numbers = #tpu.dot_dimension_numbers<[1], [0], [0], [1], [0, 0, 1, 1], [], []>} : vector<128x16xbf16>, vector<16x32xbf16>, vector<128x32xf32> -> vector<128x32xf32>
    %c0_23 = arith.constant 0 : index
    %c0_24 = arith.constant 0 : index
    %34 = vector.load %arg9[%c0_23, %c0_24] : memref<1x32xf32, #tpu.memory_space<vmem>>, vector<1x32xf32>
    %35 = vector.broadcast %34 : vector<1x32xf32> to vector<128x32xf32>
    %36 = arith.addf %33, %35 : vector<128x32xf32>
    %cst_25 = arith.constant 0.000000e+00 : f32
    %37 = vector.broadcast %cst_25 : f32 to vector<128x32xf32>
    %38 = arith.maximumf %36, %37 : vector<128x32xf32>
    %39 = arith.truncf %38 : vector<128x32xf32> to vector<128x32xbf16>
    %c0_26 = arith.constant 0 : index
    %c0_27 = arith.constant 0 : index
    %40 = vector.load %arg10[%c0_26, %c0_27] : memref<32x64xbf16, #tpu.memory_space<vmem>>, vector<32x64xbf16>
    %cst_28 = arith.constant dense<0.000000e+00> : vector<128x64xf32>
    %41 = tpu.matmul %39, %40, %cst_28 {dimension_numbers = #tpu.dot_dimension_numbers<[1], [0], [0], [1], [0, 0, 1, 1], [], []>} : vector<128x32xbf16>, vector<32x64xbf16>, vector<128x64xf32> -> vector<128x64xf32>
    %c0_29 = arith.constant 0 : index
    %c0_30 = arith.constant 0 : index
    %42 = vector.load %arg11[%c0_29, %c0_30] : memref<1x64xf32, #tpu.memory_space<vmem>>, vector<1x64xf32>
    %43 = vector.broadcast %42 : vector<1x64xf32> to vector<128x64xf32>
    %44 = arith.addf %41, %43 : vector<128x64xf32>
    %cst_31 = arith.constant 0.000000e+00 : f32
    %45 = vector.broadcast %cst_31 : f32 to vector<128x64xf32>
    %46 = arith.maximumf %44, %45 : vector<128x64xf32>
    %47 = arith.truncf %46 : vector<128x64xf32> to vector<128x64xbf16>
    %c0_32 = arith.constant 0 : index
    %c0_33 = arith.constant 0 : index
    %48 = vector.load %arg12[%c0_32, %c0_33] : memref<64x196xbf16, #tpu.memory_space<vmem>>, vector<64x196xbf16>
    %cst_34 = arith.constant dense<0.000000e+00> : vector<128x196xf32>
    %49 = tpu.matmul %47, %48, %cst_34 {dimension_numbers = #tpu.dot_dimension_numbers<[1], [0], [0], [1], [0, 0, 1, 1], [], []>} : vector<128x64xbf16>, vector<64x196xbf16>, vector<128x196xf32> -> vector<128x196xf32>
    %c0_35 = arith.constant 0 : index
    %c0_36 = arith.constant 0 : index
    %50 = vector.load %arg13[%c0_35, %c0_36] : memref<1x196xf32, #tpu.memory_space<vmem>>, vector<1x196xf32>
    %51 = vector.broadcast %50 : vector<1x196xf32> to vector<128x196xf32>
    %52 = arith.addf %49, %51 : vector<128x196xf32>
    %cst_37 = arith.constant 0.000000e+00 : f32
    %53 = vector.broadcast %cst_37 : f32 to vector<128x196xf32>
    %54 = arith.subf %53, %52 : vector<128x196xf32>
    %55 = math.exp %54 : vector<128x196xf32>
    %cst_38 = arith.constant 1.000000e+00 : f32
    %56 = vector.broadcast %cst_38 : f32 to vector<128x196xf32>
    %57 = arith.addf %56, %55 : vector<128x196xf32>
    %58 = tpu.reciprocal %57 {approx = true} : vector<128x196xf32> -> vector<128x196xf32>
    %59 = arith.truncf %58 : vector<128x196xf32> to vector<128x196xbf16>
    %c0_39 = arith.constant 0 : index
    %c0_40 = arith.constant 0 : index
    %60 = vector.load %arg15[%c0_39, %c0_40] : memref<128x196xbf16, #tpu.memory_space<vmem>>, vector<128x196xbf16>
    tpu.vector_store %arg15[%c0_39, %c0_40], %59 {strides = array<i32>} : memref<128x196xbf16, #tpu.memory_space<vmem>>, vector<128x196xbf16>,
    %c0_41 = arith.constant 0 : index
    %c0_42 = arith.constant 0 : index
    %61 = vector.load %arg16[%c0_41, %c0_42] : memref<128x16xf32, #tpu.memory_space<vmem>>, vector<128x16xf32>
    tpu.vector_store %arg16[%c0_41, %c0_42], %23 {strides = array<i32>} : memref<128x16xf32, #tpu.memory_space<vmem>>, vector<128x16xf32>,
    %c0_43 = arith.constant 0 : index
    %c0_44 = arith.constant 0 : index
    %62 = vector.load %arg17[%c0_43, %c0_44] : memref<128x16xf32, #tpu.memory_space<vmem>>, vector<128x16xf32>
    tpu.vector_store %arg17[%c0_43, %c0_44], %24 {strides = array<i32>} : memref<128x16xf32, #tpu.memory_space<vmem>>, vector<128x16xf32>,
    return
  }
  func.func @transform_0(%arg0: i32) -> (i32, i32) {
    %c0_i32 = arith.constant 0 : i32
    %c0_i32_0 = arith.constant 0 : i32
    return %arg0, %c0_i32 : i32, i32
  }
  func.func @transform_1(%arg0: i32) -> (i32, i32) {
    %c0_i32 = arith.constant 0 : i32
    %c0_i32_0 = arith.constant 0 : i32
    %c0_i32_1 = arith.constant 0 : i32
    return %c0_i32, %c0_i32_0 : i32, i32
  }
  func.func @transform_2(%arg0: i32) -> (i32, i32) {
    %c0_i32 = arith.constant 0 : i32
    %c0_i32_0 = arith.constant 0 : i32
    %c0_i32_1 = arith.constant 0 : i32
    return %c0_i32, %c0_i32_0 : i32, i32
  }
  func.func @transform_3(%arg0: i32) -> (i32, i32) {
    %c0_i32 = arith.constant 0 : i32
    %c0_i32_0 = arith.constant 0 : i32
    %c0_i32_1 = arith.constant 0 : i32
    return %c0_i32, %c0_i32_0 : i32, i32
  }
  func.func @transform_4(%arg0: i32) -> (i32, i32) {
    %c0_i32 = arith.constant 0 : i32
    %c0_i32_0 = arith.constant 0 : i32
    %c0_i32_1 = arith.constant 0 : i32
    return %c0_i32, %c0_i32_0 : i32, i32
  }
  func.func @transform_5(%arg0: i32) -> (i32, i32) {
    %c0_i32 = arith.constant 0 : i32
    %c0_i32_0 = arith.constant 0 : i32
    %c0_i32_1 = arith.constant 0 : i32
    return %c0_i32, %c0_i32_0 : i32, i32
  }
  func.func @transform_6(%arg0: i32) -> (i32, i32) {
    %c0_i32 = arith.constant 0 : i32
    %c0_i32_0 = arith.constant 0 : i32
    %c0_i32_1 = arith.constant 0 : i32
    return %c0_i32, %c0_i32_0 : i32, i32
  }
  func.func @transform_7(%arg0: i32) -> (i32, i32) {
    %c0_i32 = arith.constant 0 : i32
    %c0_i32_0 = arith.constant 0 : i32
    %c0_i32_1 = arith.constant 0 : i32
    return %c0_i32, %c0_i32_0 : i32, i32
  }
  func.func @transform_8(%arg0: i32) -> (i32, i32) {
    %c0_i32 = arith.constant 0 : i32
    %c0_i32_0 = arith.constant 0 : i32
    %c0_i32_1 = arith.constant 0 : i32
    return %c0_i32, %c0_i32_0 : i32, i32
  }
  func.func @transform_9(%arg0: i32) -> (i32, i32) {
    %c0_i32 = arith.constant 0 : i32
    %c0_i32_0 = arith.constant 0 : i32
    %c0_i32_1 = arith.constant 0 : i32
    return %c0_i32, %c0_i32_0 : i32, i32
  }
  func.func @transform_10(%arg0: i32) -> (i32, i32) {
    %c0_i32 = arith.constant 0 : i32
    %c0_i32_0 = arith.constant 0 : i32
    %c0_i32_1 = arith.constant 0 : i32
    return %c0_i32, %c0_i32_0 : i32, i32
  }
  func.func @transform_11(%arg0: i32) -> (i32, i32) {
    %c0_i32 = arith.constant 0 : i32
    %c0_i32_0 = arith.constant 0 : i32
    %c0_i32_1 = arith.constant 0 : i32
    return %c0_i32, %c0_i32_0 : i32, i32
  }
  func.func @transform_12(%arg0: i32) -> (i32, i32) {
    %c0_i32 = arith.constant 0 : i32
    %c0_i32_0 = arith.constant 0 : i32
    %c0_i32_1 = arith.constant 0 : i32
    return %c0_i32, %c0_i32_0 : i32, i32
  }
  func.func @transform_13(%arg0: i32) -> (i32, i32) {
    %c0_i32 = arith.constant 0 : i32
    %c0_i32_0 = arith.constant 0 : i32
    return %arg0, %c0_i32 : i32, i32
  }
  func.func @transform_14(%arg0: i32) -> (i32, i32) {
    %c0_i32 = arith.constant 0 : i32
    %c0_i32_0 = arith.constant 0 : i32
    return %arg0, %c0_i32 : i32, i32
  }
  func.func @transform_15(%arg0: i32) -> (i32, i32) {
    %c0_i32 = arith.constant 0 : i32
    %c0_i32_0 = arith.constant 0 : i32
    return %arg0, %c0_i32 : i32, i32
  }
  func.func @transform_16(%arg0: i32) -> (i32, i32) {
    %c0_i32 = arith.constant 0 : i32
    %c0_i32_0 = arith.constant 0 : i32
    return %arg0, %c0_i32 : i32, i32
  }
}

</mosaic_0001>

<llo_original>
// kernel: var_aenc_forward.1
$region0: #{var_aenc_forward.1}
  #allocation0 [shape = 'u32[]', space=smem, size = 0x4, offset = 0x4, fixed_abs, tag = 'smem constant byte address 0x4 - core index']
  #allocation1 [shape = 'u32[72,128]{1,0:T(1,128)}', space=vmem, size = 0x9000, scoped, tag = 'internal scratch']
  %s0 = inlined_call_operand.vmem [shape: f32[256,196], index: 0, kind: input, shape index: {}]
  %s1 = inlined_call_operand.vmem [shape: bf16[196,64], index: 1, kind: input, shape index: {}]
  %s2 = inlined_call_operand.vmem [shape: f32[1,64], index: 2, kind: input, shape index: {}]
  %s3 = inlined_call_operand.vmem [shape: bf16[64,32], index: 3, kind: input, shape index: {}]
  %s4 = inlined_call_operand.vmem [shape: f32[1,32], index: 4, kind: input, shape index: {}]
  %s5 = inlined_call_operand.vmem [shape: bf16[32,32], index: 5, kind: input, shape index: {}]
  %s6 = inlined_call_operand.vmem [shape: f32[1,32], index: 6, kind: input, shape index: {}]
  %s7 = inlined_call_operand.vmem [shape: bf16[16,32], index: 7, kind: input, shape index: {}]
  %s8 = inlined_call_operand.vmem [shape: f32[1,32], index: 8, kind: input, shape index: {}]
  %s9 = inlined_call_operand.vmem [shape: bf16[32,64], index: 9, kind: input, shape index: {}]
  %s10 = inlined_call_operand.vmem [shape: f32[1,64], index: 10, kind: input, shape index: {}]
  %s11 = inlined_call_operand.vmem [shape: bf16[64,196], index: 11, kind: input, shape index: {}]
  %s12 = inlined_call_operand.vmem [shape: f32[1,196], index: 12, kind: input, shape index: {}]
  %s13 = inlined_call_operand.vmem [shape: f32[256,16], index: 13, kind: input, shape index: {}]
  %s14 = inlined_call_operand.vmem [shape: bf16[256,196], index: 14, kind: output, shape index: {0}]
  %s15 = inlined_call_operand.vmem [shape: f32[256,16], index: 15, kind: output, shape index: {1}]
  %s16 = inlined_call_operand.vmem [shape: f32[256,16], index: 16, kind: output, shape index: {2}]
  %17 = xla_tuple %s14, %s15, %s16
  %s18 = sld [smem:[#allocation0]]
  $region105: #{var_aenc_forward.1} parent=0
    _
  %s20 = ssub.s32 1, %s18
  %s21 = scalar_select 0, %s20, %s18
  loop: start=0, step=1, limit=4
  $region2: #{var_aenc_forward.1} parent=0 // loop_pre_header
    _
  $region3: #{var_aenc_forward.1} parent=0 // loop_header
    %s23 = sphi 0, %s27
    %p24 = scmp.ge.s32.totalorder %s23, 4
    %s33 = sphi 0, %s35
    %s36 = sphi 0, %s33
    %s37 = sphi 0, %s36
    %s53 = sphi 0, %s37
    %s57 = sphi 0, %s57
    %s59 = sphi 0, %s57
    %s60 = sphi 0, %s59
    %s74 = sphi 0, %s60
    %s78 = sphi 0, %s78
    %s80 = sphi 0, %s78
    %s81 = sphi 0, %s80
    %s95 = sphi 0, %s81
    %s99 = sphi 0, %s99
    %s101 = sphi 0, %s99
    %s102 = sphi 0, %s101
    %s116 = sphi 0, %s102
    %s120 = sphi 0, %s120
    %s122 = sphi 0, %s120
    %s123 = sphi 0, %s122
    %s137 = sphi 0, %s123
    %s141 = sphi 0, %s141
    %s143 = sphi 0, %s141
    %s144 = sphi 0, %s143
    %s158 = sphi 0, %s144
    %s162 = sphi 0, %s162
    %s164 = sphi 0, %s162
    %s165 = sphi 0, %s164
    %s179 = sphi 0, %s165
    %s183 = sphi 0, %s183
    %s185 = sphi 0, %s183
    %s186 = sphi 0, %s185
    %s200 = sphi 0, %s186
    %s204 = sphi 0, %s204
    %s206 = sphi 0, %s204
    %s207 = sphi 0, %s206
    %s221 = sphi 0, %s207
    %s225 = sphi 0, %s225
    %s227 = sphi 0, %s225
    %s228 = sphi 0, %s227
    %s242 = sphi 0, %s228
    %s246 = sphi 0, %s246
    %s248 = sphi 0, %s246
    %s249 = sphi 0, %s248
    %s263 = sphi 0, %s249
    %s267 = sphi 0, %s267
    %s269 = sphi 0, %s267
    %s270 = sphi 0, %s269
    %s284 = sphi 0, %s270
    %s288 = sphi 0, %s288
    %s290 = sphi 0, %s288
    %s291 = sphi 0, %s290
    %s305 = sphi 0, %s291
    %s311 = sphi 0, %s313
    %s314 = sphi 0, %s311
    %s315 = sphi 0, %s314
    %s331 = sphi 0, %s315
    %s337 = sphi 0, %s339
    %s340 = sphi 0, %s337
    %s341 = sphi 0, %s340
    %s357 = sphi 0, %s341
    %s363 = sphi 0, %s365
    %s366 = sphi 0, %s363
    %s367 = sphi 0, %s366
    %s383 = sphi 0, %s367
    %s389 = sphi 0, %s391
    %s392 = sphi 0, %s389
    %s393 = sphi 0, %s392
    %s409 = sphi 0, %s393
  $region4: #{var_aenc_forward.1} parent=0 // loop_header_branch
    %26 = sbr.rel (%p24) target = $region8
  $region5: #{var_aenc_forward.1} parent=0 // loop_body
    %s28 = ssub.s32 %s23, 1
    %s29 = ssub.s32 %s23, 2
    %s30 = sadd.s32 %s23, 1
    %s31 = ssub.s32 %s23, %s30
    %p32 = scmp.eq.s32.totalorder %s31, 0
    %s34 = sadd.s32 %s33, 1
    %s35 = scalar_select %p32, %s33, %s34
    %p38 = pneg %p32
    %p39 = scmp.eq.s32.totalorder %s23, 1
    %p40 = por %p38, %p39
    %p41 = scmp.ne.s32.totalorder %s33, %s36
    %p42 = scmp.eq.s32.totalorder %s23, 0
    %p43 = por %p41, %p42
    %p44 = scmp.ne.s32.totalorder %s33, %s36
    %p45 = scmp.eq.s32.totalorder %s28, 1
    %p46 = por %p44, %p45
    %p47 = scmp.ne.s32.totalorder %s36, %s37
    %p48 = scmp.eq.s32.totalorder %s28, 0
    %p49 = por %p47, %p48
    %p50 = scmp.ne.s32.totalorder %s36, %s37
    %p51 = scmp.eq.s32.totalorder %s29, 1
    %p52 = por %p50, %p51
    %p54 = scmp.ne.s32.totalorder %s37, %s53
    %p55 = scmp.eq.s32.totalorder %s29, 0
    %p56 = por %p54, %p55
    %s58 = sadd.s32 %s57, 1
    %p61 = scmp.eq.s32.totalorder %s23, 1
    %p62 = scmp.ne.s32.totalorder %s57, %s59
    %p63 = scmp.eq.s32.totalorder %s23, 0
    %p64 = por %p62, %p63
    %p65 = scmp.ne.s32.totalorder %s57, %s59
    %p66 = scmp.eq.s32.totalorder %s28, 1
    %p67 = por %p65, %p66
    %p68 = scmp.ne.s32.totalorder %s59, %s60
    %p69 = scmp.eq.s32.totalorder %s28, 0
    %p70 = por %p68, %p69
    %p71 = scmp.ne.s32.totalorder %s59, %s60
    %p72 = scmp.eq.s32.totalorder %s29, 1
    %p73 = por %p71, %p72
    %p75 = scmp.ne.s32.totalorder %s60, %s74
    %p76 = scmp.eq.s32.totalorder %s29, 0
    %p77 = por %p75, %p76
    %s79 = sadd.s32 %s78, 1
    %p82 = scmp.eq.s32.totalorder %s23, 1
    %p83 = scmp.ne.s32.totalorder %s78, %s80
    %p84 = scmp.eq.s32.totalorder %s23, 0
    %p85 = por %p83, %p84
    %p86 = scmp.ne.s32.totalorder %s78, %s80
    %p87 = scmp.eq.s32.totalorder %s28, 1
    %p88 = por %p86, %p87
    %p89 = scmp.ne.s32.totalorder %s80, %s81
    %p90 = scmp.eq.s32.totalorder %s28, 0
    %p91 = por %p89, %p90
    %p92 = scmp.ne.s32.totalorder %s80, %s81
    %p93 = scmp.eq.s32.totalorder %s29, 1
    %p94 = por %p92, %p93
    %p96 = scmp.ne.s32.totalorder %s81, %s95
    %p97 = scmp.eq.s32.totalorder %s29, 0
    %p98 = por %p96, %p97
    %s100 = sadd.s32 %s99, 1
    %p103 = scmp.eq.s32.totalorder %s23, 1
    %p104 = scmp.ne.s32.totalorder %s99, %s101
    %p105 = scmp.eq.s32.totalorder %s23, 0
    %p106 = por %p104, %p105
    %p107 = scmp.ne.s32.totalorder %s99, %s101
    %p108 = scmp.eq.s32.totalorder %s28, 1
    %p109 = por %p107, %p108
    %p110 = scmp.ne.s32.totalorder %s101, %s102
    %p111 = scmp.eq.s32.totalorder %s28, 0
    %p112 = por %p110, %p111
    %p113 = scmp.ne.s32.totalorder %s101, %s102
    %p114 = scmp.eq.s32.totalorder %s29, 1
    %p115 = por %p113, %p114
    %p117 = scmp.ne.s32.totalorder %s102, %s116
    %p118 = scmp.eq.s32.totalorder %s29, 0
    %p119 = por %p117, %p118
    %s121 = sadd.s32 %s120, 1
    %p124 = scmp.eq.s32.totalorder %s23, 1
    %p125 = scmp.ne.s32.totalorder %s120, %s122
    %p126 = scmp.eq.s32.totalorder %s23, 0
    %p127 = por %p125, %p126
    %p128 = scmp.ne.s32.totalorder %s120, %s122
    %p129 = scmp.eq.s32.totalorder %s28, 1
    %p130 = por %p128, %p129
    %p131 = scmp.ne.s32.totalorder %s122, %s123
    %p132 = scmp.eq.s32.totalorder %s28, 0
    %p133 = por %p131, %p132
    %p134 = scmp.ne.s32.totalorder %s122, %s123
    %p135 = scmp.eq.s32.totalorder %s29, 1
    %p136 = por %p134, %p135
    %p138 = scmp.ne.s32.totalorder %s123, %s137
    %p139 = scmp.eq.s32.totalorder %s29, 0
    %p140 = por %p138, %p139
    %s142 = sadd.s32 %s141, 1
    %p145 = scmp.eq.s32.totalorder %s23, 1
    %p146 = scmp.ne.s32.totalorder %s141, %s143
    %p147 = scmp.eq.s32.totalorder %s23, 0
    %p148 = por %p146, %p147
    %p149 = scmp.ne.s32.totalorder %s141, %s143
    %p150 = scmp.eq.s32.totalorder %s28, 1
    %p151 = por %p149, %p150
    %p152 = scmp.ne.s32.totalorder %s143, %s144
    %p153 = scmp.eq.s32.totalorder %s28, 0
    %p154 = por %p152, %p153
    %p155 = scmp.ne.s32.totalorder %s143, %s144
    %p156 = scmp.eq.s32.totalorder %s29, 1
    %p157 = por %p155, %p156
    %p159 = scmp.ne.s32.totalorder %s144, %s158
    %p160 = scmp.eq.s32.totalorder %s29, 0
    %p161 = por %p159, %p160
    %s163 = sadd.s32 %s162, 1
    %p166 = scmp.eq.s32.totalorder %s23, 1
    %p167 = scmp.ne.s32.totalorder %s162, %s164
    %p168 = scmp.eq.s32.totalorder %s23, 0
    %p169 = por %p167, %p168
    %p170 = scmp.ne.s32.totalorder %s162, %s164
    %p171 = scmp.eq.s32.totalorder %s28, 1
    %p172 = por %p170, %p171
    %p173 = scmp.ne.s32.totalorder %s164, %s165
    %p174 = scmp.eq.s32.totalorder %s28, 0
    %p175 = por %p173, %p174
    %p176 = scmp.ne.s32.totalorder %s164, %s165
    %p177 = scmp.eq.s32.totalorder %s29, 1
    %p178 = por %p176, %p177
    %p180 = scmp.ne.s32.totalorder %s165, %s179
    %p181 = scmp.eq.s32.totalorder %s29, 0
    %p182 = por %p180, %p181
    %s184 = sadd.s32 %s183, 1
    %p187 = scmp.eq.s32.totalorder %s23, 1
    %p188 = scmp.ne.s32.totalorder %s183, %s185
    %p189 = scmp.eq.s32.totalorder %s23, 0
    %p190 = por %p188, %p189
    %p191 = scmp.ne.s32.totalorder %s183, %s185
    %p192 = scmp.eq.s32.totalorder %s28, 1
    %p193 = por %p191, %p192
    %p194 = scmp.ne.s32.totalorder %s185, %s186
    %p195 = scmp.eq.s32.totalorder %s28, 0
    %p196 = por %p194, %p195
    %p197 = scmp.ne.s32.totalorder %s185, %s186
    %p198 = scmp.eq.s32.totalorder %s29, 1
    %p199 = por %p197, %p198
    %p201 = scmp.ne.s32.totalorder %s186, %s200
    %p202 = scmp.eq.s32.totalorder %s29, 0
    %p203 = por %p201, %p202
    %s205 = sadd.s32 %s204, 1
    %p208 = scmp.eq.s32.totalorder %s23, 1
    %p209 = scmp.ne.s32.totalorder %s204, %s206
    %p210 = scmp.eq.s32.totalorder %s23, 0
    %p211 = por %p209, %p210
    %p212 = scmp.ne.s32.totalorder %s204, %s206
    %p213 = scmp.eq.s32.totalorder %s28, 1
    %p214 = por %p212, %p213
    %p215 = scmp.ne.s32.totalorder %s206, %s207
    %p216 = scmp.eq.s32.totalorder %s28, 0
    %p217 = por %p215, %p216
    %p218 = scmp.ne.s32.totalorder %s206, %s207
    %p219 = scmp.eq.s32.totalorder %s29, 1
    %p220 = por %p218, %p219
    %p222 = scmp.ne.s32.totalorder %s207, %s221
    %p223 = scmp.eq.s32.totalorder %s29, 0
    %p224 = por %p222, %p223
    %s226 = sadd.s32 %s225, 1
    %p229 = scmp.eq.s32.totalorder %s23, 1
    %p230 = scmp.ne.s32.totalorder %s225, %s227
    %p231 = scmp.eq.s32.totalorder %s23, 0
    %p232 = por %p230, %p231
    %p233 = scmp.ne.s32.totalorder %s225, %s227
    %p234 = scmp.eq.s32.totalorder %s28, 1
    %p235 = por %p233, %p234
    %p236 = scmp.ne.s32.totalorder %s227, %s228
    %p237 = scmp.eq.s32.totalorder %s28, 0
    %p238 = por %p236, %p237
    %p239 = scmp.ne.s32.totalorder %s227, %s228
    %p240 = scmp.eq.s32.totalorder %s29, 1
    %p241 = por %p239, %p240
    %p243 = scmp.ne.s32.totalorder %s228, %s242
    %p244 = scmp.eq.s32.totalorder %s29, 0
    %p245 = por %p243, %p244
    %s247 = sadd.s32 %s246, 1
    %p250 = scmp.eq.s32.totalorder %s23, 1
    %p251 = scmp.ne.s32.totalorder %s246, %s248
    %p252 = scmp.eq.s32.totalorder %s23, 0
    %p253 = por %p251, %p252
    %p254 = scmp.ne.s32.totalorder %s246, %s248
    %p255 = scmp.eq.s32.totalorder %s28, 1
    %p256 = por %p254, %p255
    %p257 = scmp.ne.s32.totalorder %s248, %s249
    %p258 = scmp.eq.s32.totalorder %s28, 0
    %p259 = por %p257, %p258
    %p260 = scmp.ne.s32.totalorder %s248, %s249
    %p261 = scmp.eq.s32.totalorder %s29, 1
    %p262 = por %p260, %p261
    %p264 = scmp.ne.s32.totalorder %s249, %s263
    %p265 = scmp.eq.s32.totalorder %s29, 0
    %p266 = por %p264, %p265
    %s268 = sadd.s32 %s267, 1
    %p271 = scmp.eq.s32.totalorder %s23, 1
    %p272 = scmp.ne.s32.totalorder %s267, %s269
    %p273 = scmp.eq.s32.totalorder %s23, 0
    %p274 = por %p272, %p273
    %p275 = scmp.ne.s32.totalorder %s267, %s269
    %p276 = scmp.eq.s32.totalorder %s28, 1
    %p277 = por %p275, %p276
    %p278 = scmp.ne.s32.totalorder %s269, %s270
    %p279 = scmp.eq.s32.totalorder %s28, 0
    %p280 = por %p278, %p279
    %p281 = scmp.ne.s32.totalorder %s269, %s270
    %p282 = scmp.eq.s32.totalorder %s29, 1
    %p283 = por %p281, %p282
    %p285 = scmp.ne.s32.totalorder %s270, %s284
    %p286 = scmp.eq.s32.totalorder %s29, 0
    %p287 = por %p285, %p286
    %s289 = sadd.s32 %s288, 1
    %p292 = scmp.eq.s32.totalorder %s23, 1
    %p293 = scmp.ne.s32.totalorder %s288, %s290
    %p294 = scmp.eq.s32.totalorder %s23, 0
    %p295 = por %p293, %p294
    %p296 = scmp.ne.s32.totalorder %s288, %s290
    %p297 = scmp.eq.s32.totalorder %s28, 1
    %p298 = por %p296, %p297
    %p299 = scmp.ne.s32.totalorder %s290, %s291
    %p300 = scmp.eq.s32.totalorder %s28, 0
    %p301 = por %p299, %p300
    %p302 = scmp.ne.s32.totalorder %s290, %s291
    %p303 = scmp.eq.s32.totalorder %s29, 1
    %p304 = por %p302, %p303
    %p306 = scmp.ne.s32.totalorder %s291, %s305
    %p307 = scmp.eq.s32.totalorder %s29, 0
    %p308 = por %p306, %p307
    %s309 = ssub.s32 %s23, %s30
    %p310 = scmp.eq.s32.totalorder %s309, 0
    %s312 = sadd.s32 %s311, 1
    %s313 = scalar_select %p310, %s311, %s312
    %p316 = pneg %p310
    %p317 = scmp.eq.s32.totalorder %s23, 1
    %p318 = por %p316, %p317
    %p319 = scmp.ne.s32.totalorder %s311, %s314
    %p320 = scmp.eq.s32.totalorder %s23, 0
    %p321 = por %p319, %p320
    %p322 = scmp.ne.s32.totalorder %s311, %s314
    %p323 = scmp.eq.s32.totalorder %s28, 1
    %p324 = por %p322, %p323
    %p325 = scmp.ne.s32.totalorder %s314, %s315
    %p326 = scmp.eq.s32.totalorder %s28, 0
    %p327 = por %p325, %p326
    %p328 = scmp.ne.s32.totalorder %s314, %s315
    %p329 = scmp.eq.s32.totalorder %s29, 1
    %p330 = por %p328, %p329
    %p332 = scmp.ne.s32.totalorder %s315, %s331
    %p333 = scmp.eq.s32.totalorder %s29, 0
    %p334 = por %p332, %p333
    %s335 = ssub.s32 %s23, %s30
    %p336 = scmp.eq.s32.totalorder %s335, 0
    %s338 = sadd.s32 %s337, 1
    %s339 = scalar_select %p336, %s337, %s338
    %p342 = pneg %p336
    %p343 = scmp.eq.s32.totalorder %s23, 1
    %p344 = por %p342, %p343
    %p345 = scmp.ne.s32.totalorder %s337, %s340
    %p346 = scmp.eq.s32.totalorder %s23, 0
    %p347 = por %p345, %p346
    %p348 = scmp.ne.s32.totalorder %s337, %s340
    %p349 = scmp.eq.s32.totalorder %s28, 1
    %p350 = por %p348, %p349
    %p351 = scmp.ne.s32.totalorder %s340, %s341
    %p352 = scmp.eq.s32.totalorder %s28, 0
    %p353 = por %p351, %p352
    %p354 = scmp.ne.s32.totalorder %s340, %s341
    %p355 = scmp.eq.s32.totalorder %s29, 1
    %p356 = por %p354, %p355
    %p358 = scmp.ne.s32.totalorder %s341, %s357
    %p359 = scmp.eq.s32.totalorder %s29, 0
    %p360 = por %p358, %p359
    %s361 = ssub.s32 %s23, %s30
    %p362 = scmp.eq.s32.totalorder %s361, 0
    %s364 = sadd.s32 %s363, 1
    %s365 = scalar_select %p362, %s363, %s364
    %p368 = pneg %p362
    %p369 = scmp.eq.s32.totalorder %s23, 1
    %p370 = por %p368, %p369
    %p371 = scmp.ne.s32.totalorder %s363, %s366
    %p372 = scmp.eq.s32.totalorder %s23, 0
    %p373 = por %p371, %p372
    %p374 = scmp.ne.s32.totalorder %s363, %s366
    %p375 = scmp.eq.s32.totalorder %s28, 1
    %p376 = por %p374, %p375
    %p377 = scmp.ne.s32.totalorder %s366, %s367
    %p378 = scmp.eq.s32.totalorder %s28, 0
    %p379 = por %p377, %p378
    %p380 = scmp.ne.s32.totalorder %s366, %s367
    %p381 = scmp.eq.s32.totalorder %s29, 1
    %p382 = por %p380, %p381
    %p384 = scmp.ne.s32.totalorder %s367, %s383
    %p385 = scmp.eq.s32.totalorder %s29, 0
    %p386 = por %p384, %p385
    %s387 = ssub.s32 %s23, %s30
    %p388 = scmp.eq.s32.totalorder %s387, 0
    %s390 = sadd.s32 %s389, 1
    %s391 = scalar_select %p388, %s389, %s390
    %p394 = pneg %p388
    %p395 = scmp.eq.s32.totalorder %s23, 1
    %p396 = por %p394, %p395
    %p397 = scmp.ne.s32.totalorder %s389, %s392
    %p398 = scmp.eq.s32.totalorder %s23, 0
    %p399 = por %p397, %p398
    %p400 = scmp.ne.s32.totalorder %s389, %s392
    %p401 = scmp.eq.s32.totalorder %s28, 1
    %p402 = por %p400, %p401
    %p403 = scmp.ne.s32.totalorder %s392, %s393
    %p404 = scmp.eq.s32.totalorder %s28, 0
    %p405 = por %p403, %p404
    %p406 = scmp.ne.s32.totalorder %s392, %s393
    %p407 = scmp.eq.s32.totalorder %s29, 1
    %p408 = por %p406, %p407
    %p410 = scmp.ne.s32.totalorder %s393, %s409
    %p411 = scmp.eq.s32.totalorder %s29, 0
    %p412 = por %p410, %p411
    %p413 = scmp.le.s32.totalorder 1, %s23
    %p414 = scmp.lt.s32.totalorder %s23, 3
    %p415 = pnand %p413, %p414
    %p416 = pneg %p415
    // Predicated region
    $region9: #{var_aenc_forward.1} parent=5 // pred_check
      _
    $region10: #{var_aenc_forward.1} parent=5 // pred_check_branch
      %418 = sbr.rel (%p415) target = $region12
    $region11: #{var_aenc_forward.1} parent=5 // pred_region
      %s419 = ssub.s32 %s23, 1
      // Predicated region
      $region13: #{var_aenc_forward.1} parent=11 // pred_check
        %p420 = pneg %p70
      $region14: #{var_aenc_forward.1} parent=11 // pred_check_branch
        %422 = sbr.rel (%p420) target = $region16
      $region15: #{var_aenc_forward.1} parent=11 // pred_region
        _
      $region16: #{var_aenc_forward.1} parent=11 // pred_fallthru
        _
      // Predicated region
      $region17: #{var_aenc_forward.1} parent=11 // pred_check
        %p423 = pneg %p91
      $region18: #{var_aenc_forward.1} parent=11 // pred_check_branch
        %425 = sbr.rel (%p423) target = $region20
      $region19: #{var_aenc_forward.1} parent=11 // pred_region
        _
      $region20: #{var_aenc_forward.1} parent=11 // pred_fallthru
        _
      // Predicated region
      $region21: #{var_aenc_forward.1} parent=11 // pred_check
        %p426 = pneg %p112
      $region22: #{var_aenc_forward.1} parent=11 // pred_check_branch
        %428 = sbr.rel (%p426) target = $region24
      $region23: #{var_aenc_forward.1} parent=11 // pred_region
        _
      $region24: #{var_aenc_forward.1} parent=11 // pred_fallthru
        _
      // Predicated region
      $region25: #{var_aenc_forward.1} parent=11 // pred_check
        %p429 = pneg %p133
      $region26: #{var_aenc_forward.1} parent=11 // pred_check_branch
        %431 = sbr.rel (%p429) target = $region28
      $region27: #{var_aenc_forward.1} parent=11 // pred_region
        _
      $region28: #{var_aenc_forward.1} parent=11 // pred_fallthru
        _
      // Predicated region
      $region29: #{var_aenc_forward.1} parent=11 // pred_check
        %p432 = pneg %p154
      $region30: #{var_aenc_forward.1} parent=11 // pred_check_branch
        %434 = sbr.rel (%p432) target = $region32
      $region31: #{var_aenc_forward.1} parent=11 // pred_region
        _
      $region32: #{var_aenc_forward.1} parent=11 // pred_fallthru
        _
      // Predicated region
      $region33: #{var_aenc_forward.1} parent=11 // pred_check
        %p435 = pneg %p175
      $region34: #{var_aenc_forward.1} parent=11 // pred_check_branch
        %437 = sbr.rel (%p435) target = $region36
      $region35: #{var_aenc_forward.1} parent=11 // pred_region
        _
      $region36: #{var_aenc_forward.1} parent=11 // pred_fallthru
        _
      // Predicated region
      $region37: #{var_aenc_forward.1} parent=11 // pred_check
        %p438 = pneg %p196
      $region38: #{var_aenc_forward.1} parent=11 // pred_check_branch
        %440 = sbr.rel (%p438) target = $region40
      $region39: #{var_aenc_forward.1} parent=11 // pred_region
        _
      $region40: #{var_aenc_forward.1} parent=11 // pred_fallthru
        _
      // Predicated region
      $region41: #{var_aenc_forward.1} parent=11 // pred_check
        %p441 = pneg %p217
      $region42: #{var_aenc_forward.1} parent=11 // pred_check_branch
        %443 = sbr.rel (%p441) target = $region44
      $region43: #{var_aenc_forward.1} parent=11 // pred_region
        _
      $region44: #{var_aenc_forward.1} parent=11 // pred_fallthru
        _
      // Predicated region
      $region45: #{var_aenc_forward.1} parent=11 // pred_check
        %p444 = pneg %p238
      $region46: #{var_aenc_forward.1} parent=11 // pred_check_branch
        %446 = sbr.rel (%p444) target = $region48
      $region47: #{var_aenc_forward.1} parent=11 // pred_region
        _
      $region48: #{var_aenc_forward.1} parent=11 // pred_fallthru
        _
      // Predicated region
      $region49: #{var_aenc_forward.1} parent=11 // pred_check
        %p447 = pneg %p259
      $region50: #{var_aenc_forward.1} parent=11 // pred_check_branch
        %449 = sbr.rel (%p447) target = $region52
      $region51: #{var_aenc_forward.1} parent=11 // pred_region
        _
      $region52: #{var_aenc_forward.1} parent=11 // pred_fallthru
        _
      // Predicated region
      $region53: #{var_aenc_forward.1} parent=11 // pred_check
        %p450 = pneg %p280
      $region54: #{var_aenc_forward.1} parent=11 // pred_check_branch
        %452 = sbr.rel (%p450) target = $region56
      $region55: #{var_aenc_forward.1} parent=11 // pred_region
        _
      $region56: #{var_aenc_forward.1} parent=11 // pred_fallthru
        _
      // Predicated region
      $region57: #{var_aenc_forward.1} parent=11 // pred_check
        %p453 = pneg %p301
      $region58: #{var_aenc_forward.1} parent=11 // pred_check_branch
        %455 = sbr.rel (%p453) target = $region60
      $region59: #{var_aenc_forward.1} parent=11 // pred_region
        _
      $region60: #{var_aenc_forward.1} parent=11 // pred_fallthru
        _
    $region12: #{var_aenc_forward.1} parent=5 // pred_fallthru
      _
    %p456 = scmp.lt.s32.totalorder %s23, 2
    // Predicated region
    $region61: #{var_aenc_forward.1} parent=5 // pred_check
      %p457 = pneg %p456
    $region62: #{var_aenc_forward.1} parent=5 // pred_check_branch
      %459 = sbr.rel (%p457) target = $region64
    $region63: #{var_aenc_forward.1} parent=5 // pred_region
      // Predicated region
      $region65: #{var_aenc_forward.1} parent=63 // pred_check
        %p460 = pneg %p43
      $region66: #{var_aenc_forward.1} parent=63 // pred_check_branch
        %462 = sbr.rel (%p460) target = $region68
      $region67: #{var_aenc_forward.1} parent=63 // pred_region
        %s463 = smul.u32 16, %s23
        %p464 = scmp.lt.s32.totalorder %s463, 31
        %s465 = scalar_select %p464, %s463, 31
        %s466 = smul.addr %s465, 2
        %s467 = smul.addr %s466, 8
        %s468 = scalar_lea.vmem %s0, %s467
        %s469 = smul.u32 16, %s23
      $region68: #{var_aenc_forward.1} parent=63 // pred_fallthru
        _
      // Predicated region
      $region69: #{var_aenc_forward.1} parent=63 // pred_check
        %p470 = pneg %p321
      $region70: #{var_aenc_forward.1} parent=63 // pred_check_branch
        %472 = sbr.rel (%p470) target = $region72
      $region71: #{var_aenc_forward.1} parent=63 // pred_region
        %s473 = smul.u32 16, %s23
        %p474 = scmp.lt.s32.totalorder %s473, 31
        %s475 = scalar_select %p474, %s473, 31
        %s476 = smul.addr %s475, 8
        %s477 = scalar_lea.vmem %s13, %s476
        %s478 = smul.u32 16, %s23
      $region72: #{var_aenc_forward.1} parent=63 // pred_fallthru
        _
    $region64: #{var_aenc_forward.1} parent=5 // pred_fallthru
      _
    %p479 = scmp.le.s32.totalorder 1, %s23
    %p480 = scmp.lt.s32.totalorder %s23, 3
    %p481 = pnand %p479, %p480
    %p482 = pneg %p481
    // Predicated region
    $region73: #{var_aenc_forward.1} parent=5 // pred_check
      _
    $region74: #{var_aenc_forward.1} parent=5 // pred_check_branch
      %484 = sbr.rel (%p481) target = $region76
    $region75: #{var_aenc_forward.1} parent=5 // pred_region
      %s485 = ssub.s32 %s23, 1
      %s486 = smul.u32 16, %s28
      %p487 = scmp.lt.s32.totalorder %s486, 31
      %s488 = scalar_select %p487, %s486, 31
      %s489 = smul.addr %s488, 2
      %s490 = smul.addr %s489, 8
      %s491 = scalar_lea.vmem %s0, %s490
      %p492 = pneg %p49
      %p493 = pneg %p46
      %p494 = pneg %p70
      %p495 = pneg %p67
      %p496 = pneg %p91
      %p497 = pneg %p88
      %p498 = pneg %p112
      %p499 = pneg %p109
      %p500 = pneg %p133
      %p501 = pneg %p130
      %p502 = pneg %p154
      %p503 = pneg %p151
      %p504 = pneg %p175
      %p505 = pneg %p172
      %p506 = pneg %p196
      %p507 = pneg %p193
      %p508 = pneg %p217
      %p509 = pneg %p214
      %p510 = pneg %p238
      %p511 = pneg %p235
      %p512 = pneg %p259
      %p513 = pneg %p256
      %p514 = pneg %p280
      %p515 = pneg %p277
      %p516 = pneg %p301
      %p517 = pneg %p298
      %s518 = smul.u32 16, %s28
      %p519 = scmp.lt.s32.totalorder %s518, 31
      %s520 = scalar_select %p519, %s518, 31
      %s521 = smul.addr %s520, 8
      %s522 = scalar_lea.vmem %s13, %s521
      %p523 = pneg %p327
      %p524 = pneg %p324
      %p525 = pneg %p353
      %p526 = pneg %p350
      %s527 = smul.u32 16, %s28
      %p528 = scmp.lt.s32.totalorder %s527, 31
      %s529 = scalar_select %p528, %s527, 31
      %s530 = smul.addr %s529, 2
      %s531 = smul.addr %s530, 4
      %s532 = scalar_lea.vmem %s14, %s531
      %p533 = pneg %p379
      %p534 = pneg %p376
      %s535 = smul.u32 16, %s28
      %p536 = scmp.lt.s32.totalorder %s535, 31
      %s537 = scalar_select %p536, %s535, 31
      %s538 = smul.addr %s537, 8
      %s539 = scalar_lea.vmem %s15, %s538
      %p540 = pneg %p405
      %p541 = pneg %p402
      %s542 = smul.u32 16, %s28
      %p543 = scmp.lt.s32.totalorder %s542, 31
      %s544 = scalar_select %p543, %s542, 31
      %s545 = smul.addr %s544, 8
      %s546 = scalar_lea.vmem %s16, %s545
      %s547 = smul.u32 16, %s28
      %p548 = scmp.lt.s32.totalorder %s547, 31
      %s549 = scalar_select %p548, %s547, 31
      %s550 = smul.addr %s549, 2
      %s551 = smul.addr %s550, 8
      %s552 = scalar_lea.vmem %s0, %s551
      %s553 = smul.u32 16, %s28
      %s554 = smul.u32 16, %s28
      %p555 = scmp.lt.s32.totalorder %s554, 31
      %s556 = scalar_select %p555, %s554, 31
      %s557 = smul.addr %s556, 8
      %s558 = scalar_lea.vmem %s13, %s557
      %s559 = smul.u32 16, %s28
      %s560 = smul.u32 16, %s28
      %p561 = scmp.lt.s32.totalorder %s560, 31
      %s562 = scalar_select %p561, %s560, 31
      %s563 = smul.addr %s562, 2
      %s564 = smul.addr %s563, 4
      %s565 = scalar_lea.vmem %s14, %s564
      %s566 = smul.u32 16, %s28
      %s567 = smul.u32 16, %s28
      %p568 = scmp.lt.s32.totalorder %s567, 31
      %s569 = scalar_select %p568, %s567, 31
      %s570 = smul.addr %s569, 8
      %s571 = scalar_lea.vmem %s15, %s570
      %s572 = smul.u32 16, %s28
      %s573 = smul.u32 16, %s28
      %p574 = scmp.lt.s32.totalorder %s573, 31
      %s575 = scalar_select %p574, %s573, 31
      %s576 = smul.addr %s575, 8
      %s577 = scalar_lea.vmem %s16, %s576
      %s578 = smul.u32 16, %s28
      %v580 = vld [vmem:[%s552] sm:$0xff]
      %v581 = vld [vmem:[%s552 + $0x8] sm:$0xff]
      %v582 = vld [vmem:[%s552 + $0x10] sm:$0xff]
      %v583 = vld [vmem:[%s552 + $0x18] sm:$0xff]
      %v584 = vld [vmem:[%s552 + $0x20] sm:$0xff]
      %v585 = vld [vmem:[%s552 + $0x28] sm:$0xff]
      %v586 = vld [vmem:[%s552 + $0x30] sm:$0xff]
      %v587 = vld [vmem:[%s552 + $0x38] sm:$0xff]
      %v588 = vld [vmem:[%s552 + $0x40] sm:$0xff]
      %v589 = vld [vmem:[%s552 + $0x48] sm:$0xff]
      %v590 = vld [vmem:[%s552 + $0x50] sm:$0xff]
      %v591 = vld [vmem:[%s552 + $0x58] sm:$0xff]
      %v592 = vld [vmem:[%s552 + $0x60] sm:$0xff]
      %v593 = vld [vmem:[%s552 + $0x68] sm:$0xff]
      %v594 = vld [vmem:[%s552 + $0x70] sm:$0xff]
      %v595 = vld [vmem:[%s552 + $0x78] sm:$0xff]
      %v596 = vld [vmem:[%s552 + $0x80] sm:$0xff]
      %v597 = vld [vmem:[%s552 + $0x88] sm:$0xff]
      %v598 = vld [vmem:[%s552 + $0x90] sm:$0xff]
      %v599 = vld [vmem:[%s552 + $0x98] sm:$0xff]
      %v600 = vld [vmem:[%s552 + $0xa0] sm:$0xff]
      %v601 = vld [vmem:[%s552 + $0xa8] sm:$0xff]
      %v602 = vld [vmem:[%s552 + $0xb0] sm:$0xff]
      %v603 = vld [vmem:[%s552 + $0xb8] sm:$0xff]
      %v604 = vld [vmem:[%s552 + $0xc0] sm:$0xff]
      %v605 = vld [vmem:[%s552 + $0xc8] sm:$0xff]
      %v606 = vld [vmem:[%s552 + $0xd0] sm:$0xff]
      %v607 = vld [vmem:[%s552 + $0xd8] sm:$0xff]
      %v608 = vld [vmem:[%s552 + $0xe0] sm:$0xff]
      %v609 = vld [vmem:[%s552 + $0xe8] sm:$0xff]
      %v610 = vld [vmem:[%s552 + $0xf0] sm:$0xff]
      %v611 = vld [vmem:[%s552 + $0xf8] sm:$0xff]
      %v612 = vpack.c.bf16 %v582, %v580
      %v613 = vpack.c.bf16 %v583, %v581
      %v614 = vpack.c.bf16 %v586, %v584
      %v615 = vpack.c.bf16 %v587, %v585
      %v616 = vpack.c.bf16 %v590, %v588
      %v617 = vpack.c.bf16 %v591, %v589
      %v618 = vpack.c.bf16 %v594, %v592
      %v619 = vpack.c.bf16 %v595, %v593
      %v620 = vpack.c.bf16 %v598, %v596
      %v621 = vpack.c.bf16 %v599, %v597
      %v622 = vpack.c.bf16 %v602, %v600
      %v623 = vpack.c.bf16 %v603, %v601
      %v624 = vpack.c.bf16 %v606, %v604
      %v625 = vpack.c.bf16 %v607, %v605
      %v626 = vpack.c.bf16 %v610, %v608
      %v627 = vpack.c.bf16 %v611, %v609
      %v628 = vld [vmem:[%s1] sm:$0xf]
      %v629 = vld [vmem:[%s1 + $0x4] sm:$0xf]
      %v630 = vld [vmem:[%s1 + $0x8] sm:$0xf]
      %v631 = vld [vmem:[%s1 + $0xc] sm:$0xf]
      %v632 = vld [vmem:[%s1 + $0x10] sm:$0xf]
      %v633 = vld [vmem:[%s1 + $0x14] sm:$0xf]
      %v634 = vld [vmem:[%s1 + $0x18] sm:$0xf]
      %v635 = vld [vmem:[%s1 + $0x1c] sm:$0xf]
      %v636 = vld [vmem:[%s1 + $0x20] sm:$0xf]
      %v637 = vld [vmem:[%s1 + $0x24] sm:$0xf]
      %v638 = vld [vmem:[%s1 + $0x28] sm:$0xf]
      %v639 = vld [vmem:[%s1 + $0x2c] sm:$0xf]
      %v640 = vld [vmem:[%s1 + $0x30] sm:$0xf]
      %v641 = vld [vmem:[%s1 + $0x34] sm:$0xf]
      %v642 = vld [vmem:[%s1 + $0x38] sm:$0xf]
      %v643 = vld [vmem:[%s1 + $0x3c] sm:$0xf]
      %v644 = vld [vmem:[%s1 + $0x40] sm:$0xf]
      %v645 = vld [vmem:[%s1 + $0x44] sm:$0xf]
      %v646 = vld [vmem:[%s1 + $0x48] sm:$0xf]
      %v647 = vld [vmem:[%s1 + $0x4c] sm:$0xf]
      %v648 = vld [vmem:[%s1 + $0x50] sm:$0xf]
      %v649 = vld [vmem:[%s1 + $0x54] sm:$0xf]
      %v650 = vld [vmem:[%s1 + $0x58] sm:$0xf]
      %v651 = vld [vmem:[%s1 + $0x5c] sm:$0xf]
      %v652 = vld [vmem:[%s1 + $0x60] sm:$0x3]
      %v653 = vld [vmem:[%s2] sm:$0x1]
      %v655 = vperm.slane %v653, 0
      %v682 = vunpack.c.l.b16 %v628
      %v683 = vunpack.c.l.b16 %v629
      %v684 = vunpack.c.l.b16 %v630
      %v685 = vunpack.c.l.b16 %v631
      %v686 = vunpack.c.l.b16 %v632
      %v687 = vunpack.c.l.b16 %v633
      %v688 = vunpack.c.l.b16 %v634
      %v689 = vunpack.c.l.b16 %v635
      %v690 = vunpack.c.l.b16 %v636
      %v691 = vunpack.c.l.b16 %v637
      %v692 = vunpack.c.l.b16 %v638
      %v693 = vunpack.c.l.b16 %v639
      %v694 = vunpack.c.l.b16 %v640
      %v695 = vunpack.c.l.b16 %v641
      %v696 = vunpack.c.l.b16 %v642
      %v697 = vunpack.c.l.b16 %v643
      %v698 = vunpack.c.l.b16 %v644
      %v699 = vunpack.c.l.b16 %v645
      %v700 = vunpack.c.l.b16 %v646
      %v701 = vunpack.c.l.b16 %v647
      %v702 = vunpack.c.l.b16 %v648
      %v703 = vunpack.c.l.b16 %v649
      %v704 = vunpack.c.l.b16 %v650
      %v705 = vunpack.c.l.b16 %v651
      %v706 = vunpack.c.l.b16 %v652
      %v707 = vpack.c.b16 %v683, %v682
      %v708 = vpack.c.b16 %v685, %v684
      %v709 = vpack.c.b16 %v687, %v686
      %v710 = vpack.c.b16 %v689, %v688
      %v711 = vpack.c.b16 %v691, %v690
      %v712 = vpack.c.b16 %v693, %v692
      %v713 = vpack.c.b16 %v695, %v694
      %v714 = vpack.c.b16 %v697, %v696
      %v715 = vpack.c.b16 %v699, %v698
      %v716 = vpack.c.b16 %v701, %v700
      %v717 = vpack.c.b16 %v703, %v702
      %v718 = vpack.c.b16 %v705, %v704
      %v719 = vpack.c.b16 %v706, %v706
      %vm732 = vcmask 556032
      %v734 = vsel %vm732, %v613, 0
      %v737 = vsel %vm732, %v615, 0
      %v740 = vsel %vm732, %v617, 0
      %v743 = vsel %vm732, %v619, 0
      %v746 = vsel %vm732, %v621, 0
      %v749 = vsel %vm732, %v623, 0
      %v752 = vsel %vm732, %v625, 0
      %v755 = vsel %vm732, %v627, 0
      %vm757 = vcmask 1041408
      %v759 = vsel %vm757, %v719, 0
      %761 = vmatpush.bf16.msra.mxu0 %v714
      %762 = vmatpush.bf16.msra.mxu0 %v713
      %763 = vmatpush.bf16.msra.mxu0 %v712
      %764 = vmatpush.bf16.msra.mxu0 %v711
      %765 = vmatpush.bf16.msra.mxu0 %v710
      %766 = vmatpush.bf16.msra.mxu0 %v709
      %767 = vmatpush.bf16.msra.mxu0 %v708
      %768 = vmatpush.bf16.msra.mxu0 %v707
      %769 = vmatmul.bf16.gmra.mxu0 %v612
      %v770 = vpop.f32.mrf.mxu0
      %v771 = vadd.f32 %v655, %v770
      %v772 = vpop.f32.mrf.mxu0
      %v773 = vadd.f32 %v655, %v772
      %774 = vmatmul.bf16.gmra.mxu0 %v614
      %v775 = vpop.f32.mrf.mxu0
      %v776 = vadd.f32 %v655, %v775
      %v777 = vpop.f32.mrf.mxu0
      %v778 = vadd.f32 %v655, %v777
      %779 = vmatmul.bf16.gmra.mxu0 %v616
      %v780 = vpop.f32.mrf.mxu0
      %v781 = vadd.f32 %v655, %v780
      %v782 = vpop.f32.mrf.mxu0
      %v783 = vadd.f32 %v655, %v782
      %784 = vmatmul.bf16.gmra.mxu0 %v618
      %v785 = vpop.f32.mrf.mxu0
      %v786 = vadd.f32 %v655, %v785
      %v787 = vpop.f32.mrf.mxu0
      %v788 = vadd.f32 %v655, %v787
      %789 = vmatmul.bf16.gmra.mxu0 %v620
      %v790 = vpop.f32.mrf.mxu0
      %v791 = vadd.f32 %v655, %v790
      %v792 = vpop.f32.mrf.mxu0
      %v793 = vadd.f32 %v655, %v792
      %794 = vmatmul.bf16.gmra.mxu0 %v622
      %v795 = vpop.f32.mrf.mxu0
      %v796 = vadd.f32 %v655, %v795
      %v797 = vpop.f32.mrf.mxu0
      %v798 = vadd.f32 %v655, %v797
      %799 = vmatmul.bf16.gmra.mxu0 %v624
      %v800 = vpop.f32.mrf.mxu0
      %v801 = vadd.f32 %v655, %v800
      %v802 = vpop.f32.mrf.mxu0
      %v803 = vadd.f32 %v655, %v802
      %804 = vmatmul.bf16.gmra.mxu0 %v626
      %v805 = vpop.f32.mrf.mxu0
      %v806 = vadd.f32 %v655, %v805
      %v807 = vpop.f32.mrf.mxu0
      %v808 = vadd.f32 %v655, %v807
      %809 = vdwg.mxu0
      %810 = vmatpush.bf16.msra.mxu0 0
      %811 = vmatpush.bf16.msra.mxu0 0
      %812 = vmatpush.bf16.msra.mxu0 0
      %813 = vmatpush.bf16.msra.mxu0 %v759
      %814 = vmatpush.bf16.msra.mxu0 %v718
      %815 = vmatpush.bf16.msra.mxu0 %v717
      %816 = vmatpush.bf16.msra.mxu0 %v716
      %817 = vmatpush.bf16.msra.mxu0 %v715
      %818 = vmatmul.bf16.gmra.mxu0 %v734
      %v819 = vpop.f32.mrf.mxu0
      %v820 = vadd.f32 %v771, %v819
      %v821 = vpop.f32.mrf.mxu0
      %v822 = vadd.f32 %v773, %v821
      %823 = vmatmul.bf16.gmra.mxu0 %v737
      %v824 = vpop.f32.mrf.mxu0
      %v825 = vadd.f32 %v776, %v824
      %v826 = vpop.f32.mrf.mxu0
      %v827 = vadd.f32 %v778, %v826
      %828 = vmatmul.bf16.gmra.mxu0 %v740
      %v829 = vpop.f32.mrf.mxu0
      %v830 = vadd.f32 %v781, %v829
      %v831 = vpop.f32.mrf.mxu0
      %v832 = vadd.f32 %v783, %v831
      %833 = vmatmul.bf16.gmra.mxu0 %v743
      %v834 = vpop.f32.mrf.mxu0
      %v835 = vadd.f32 %v786, %v834
      %v836 = vpop.f32.mrf.mxu0
      %v837 = vadd.f32 %v788, %v836
      %838 = vmatmul.bf16.gmra.mxu0 %v746
      %v839 = vpop.f32.mrf.mxu0
      %v840 = vadd.f32 %v791, %v839
      %v841 = vpop.f32.mrf.mxu0
      %v842 = vadd.f32 %v793, %v841
      %843 = vmatmul.bf16.gmra.mxu0 %v749
      %v844 = vpop.f32.mrf.mxu0
      %v845 = vadd.f32 %v796, %v844
      %v846 = vpop.f32.mrf.mxu0
      %v847 = vadd.f32 %v798, %v846
      %848 = vmatmul.bf16.gmra.mxu0 %v752
      %v849 = vpop.f32.mrf.mxu0
      %v850 = vadd.f32 %v801, %v849
      %v851 = vpop.f32.mrf.mxu0
      %v852 = vadd.f32 %v803, %v851
      %853 = vmatmul.bf16.gmra.mxu0 %v755
      %v854 = vpop.f32.mrf.mxu0
      %v855 = vadd.f32 %v806, %v854
      %v856 = vpop.f32.mrf.mxu0
      %v857 = vadd.f32 %v808, %v856
      %858 = vdwg.mxu0
      %v859 = vmax.f32 %v820, 0.0
      %v860 = vmax.f32 %v822, 0.0
      %v861 = vmax.f32 %v825, 0.0
      %v862 = vmax.f32 %v827, 0.0
      %v863 = vmax.f32 %v830, 0.0
      %v864 = vmax.f32 %v832, 0.0
      %v865 = vmax.f32 %v835, 0.0
      %v866 = vmax.f32 %v837, 0.0
      %v867 = vmax.f32 %v840, 0.0
      %v868 = vmax.f32 %v842, 0.0
      %v869 = vmax.f32 %v845, 0.0
      %v870 = vmax.f32 %v847, 0.0
      %v871 = vmax.f32 %v850, 0.0
      %v872 = vmax.f32 %v852, 0.0
      %v873 = vmax.f32 %v855, 0.0
      %v874 = vmax.f32 %v857, 0.0
      %v875 = vpack.c.bf16 %v860, %v859
      %v876 = vpack.c.bf16 %v862, %v861
      %v877 = vpack.c.bf16 %v864, %v863
      %v878 = vpack.c.bf16 %v866, %v865
      %v879 = vpack.c.bf16 %v868, %v867
      %v880 = vpack.c.bf16 %v870, %v869
      %v881 = vpack.c.bf16 %v872, %v871
      %v882 = vpack.c.bf16 %v874, %v873
      %v883 = vld [vmem:[%s3] sm:$0xf]
      %v884 = vld [vmem:[%s3 + $0x4] sm:$0xf]
      %v885 = vld [vmem:[%s3 + $0x8] sm:$0xf]
      %v886 = vld [vmem:[%s3 + $0xc] sm:$0xf]
      %v887 = vld [vmem:[%s3 + $0x10] sm:$0xf]
      %v888 = vld [vmem:[%s3 + $0x14] sm:$0xf]
      %v889 = vld [vmem:[%s3 + $0x18] sm:$0xf]
      %v890 = vld [vmem:[%s3 + $0x1c] sm:$0xf]
      %v891 = vld [vmem:[%s4] sm:$0x1]
      %v893 = vperm.slane %v891, 0
      %v903 = vunpack.c.l.b16 %v883
      %v904 = vunpack.c.l.b16 %v884
      %v905 = vunpack.c.l.b16 %v885
      %v906 = vunpack.c.l.b16 %v886
      %v907 = vunpack.c.l.b16 %v887
      %v908 = vunpack.c.l.b16 %v888
      %v909 = vunpack.c.l.b16 %v889
      %v910 = vunpack.c.l.b16 %v890
      %v911 = vpack.c.b16 %v904, %v903
      %v912 = vpack.c.b16 %v906, %v905
      %v913 = vpack.c.b16 %v908, %v907
      %v914 = vpack.c.b16 %v910, %v909
      %vm919 = vcmask 523264
      %v921 = vsel %vm919, %v875, 0
      %v924 = vsel %vm919, %v876, 0
      %v927 = vsel %vm919, %v877, 0
      %v930 = vsel %vm919, %v878, 0
      %v933 = vsel %vm919, %v879, 0
      %v936 = vsel %vm919, %v880, 0
      %v939 = vsel %vm919, %v881, 0
      %v942 = vsel %vm919, %v882, 0
      %944 = vmatpush.bf16.msra.mxu0 0
      %945 = vmatpush.bf16.msra.mxu0 0
      %946 = vmatpush.bf16.msra.mxu0 0
      %947 = vmatpush.bf16.msra.mxu0 0
      %948 = vmatpush.bf16.msra.mxu0 %v914
      %949 = vmatpush.bf16.msra.mxu0 %v913
      %950 = vmatpush.bf16.msra.mxu0 %v912
      %951 = vmatpush.bf16.msra.mxu0 %v911
      %952 = vmatmul.bf16.gmra.mxu0 %v921
      %v953 = vpop.f32.mrf.mxu0
      %v954 = vadd.f32 %v893, %v953
      %v955 = vpop.f32.mrf.mxu0
      %v956 = vadd.f32 %v893, %v955
      %957 = vmatmul.bf16.gmra.mxu0 %v924
      %v958 = vpop.f32.mrf.mxu0
      %v959 = vadd.f32 %v893, %v958
      %v960 = vpop.f32.mrf.mxu0
      %v961 = vadd.f32 %v893, %v960
      %962 = vmatmul.bf16.gmra.mxu0 %v927
      %v963 = vpop.f32.mrf.mxu0
      %v964 = vadd.f32 %v893, %v963
      %v965 = vpop.f32.mrf.mxu0
      %v966 = vadd.f32 %v893, %v965
      %967 = vmatmul.bf16.gmra.mxu0 %v930
      %v968 = vpop.f32.mrf.mxu0
      %v969 = vadd.f32 %v893, %v968
      %v970 = vpop.f32.mrf.mxu0
      %v971 = vadd.f32 %v893, %v970
      %972 = vmatmul.bf16.gmra.mxu0 %v933
      %v973 = vpop.f32.mrf.mxu0
      %v974 = vadd.f32 %v893, %v973
      %v975 = vpop.f32.mrf.mxu0
      %v976 = vadd.f32 %v893, %v975
      %977 = vmatmul.bf16.gmra.mxu0 %v936
      %v978 = vpop.f32.mrf.mxu0
      %v979 = vadd.f32 %v893, %v978
      %v980 = vpop.f32.mrf.mxu0
      %v981 = vadd.f32 %v893, %v980
      %982 = vmatmul.bf16.gmra.mxu0 %v939
      %v983 = vpop.f32.mrf.mxu0
      %v984 = vadd.f32 %v893, %v983
      %v985 = vpop.f32.mrf.mxu0
      %v986 = vadd.f32 %v893, %v985
      %987 = vmatmul.bf16.gmra.mxu0 %v942
      %v988 = vpop.f32.mrf.mxu0
      %v989 = vadd.f32 %v893, %v988
      %v990 = vpop.f32.mrf.mxu0
      %v991 = vadd.f32 %v893, %v990
      %992 = vdwg.mxu0
      %v993 = vmax.f32 %v954, 0.0
      %v994 = vmax.f32 %v956, 0.0
      %v995 = vmax.f32 %v959, 0.0
      %v996 = vmax.f32 %v961, 0.0
      %v997 = vmax.f32 %v964, 0.0
      %v998 = vmax.f32 %v966, 0.0
      %v999 = vmax.f32 %v969, 0.0
      %v1000 = vmax.f32 %v971, 0.0
      %v1001 = vmax.f32 %v974, 0.0
      %v1002 = vmax.f32 %v976, 0.0
      %v1003 = vmax.f32 %v979, 0.0
      %v1004 = vmax.f32 %v981, 0.0
      %v1005 = vmax.f32 %v984, 0.0
      %v1006 = vmax.f32 %v986, 0.0
      %v1007 = vmax.f32 %v989, 0.0
      %v1008 = vmax.f32 %v991, 0.0
      %v1009 = vpack.c.bf16 %v994, %v993
      %v1010 = vpack.c.bf16 %v996, %v995
      %v1011 = vpack.c.bf16 %v998, %v997
      %v1012 = vpack.c.bf16 %v1000, %v999
      %v1013 = vpack.c.bf16 %v1002, %v1001
      %v1014 = vpack.c.bf16 %v1004, %v1003
      %v1015 = vpack.c.bf16 %v1006, %v1005
      %v1016 = vpack.c.bf16 %v1008, %v1007
      %v1017 = vld [vmem:[%s5] sm:$0xf]
      %v1018 = vld [vmem:[%s5 + $0x4] sm:$0xf]
      %v1019 = vld [vmem:[%s5 + $0x8] sm:$0xf]
      %v1020 = vld [vmem:[%s5 + $0xc] sm:$0xf]
      %v1021 = vld [vmem:[%s6] sm:$0x1]
      %v1023 = vperm.slane %v1021, 0
      %v1029 = vunpack.c.l.b16 %v1017
      %v1030 = vunpack.c.l.b16 %v1018
      %v1031 = vunpack.c.l.b16 %v1019
      %v1032 = vunpack.c.l.b16 %v1020
      %v1033 = vpack.c.b16 %v1030, %v1029
      %v1034 = vpack.c.b16 %v1032, %v1031
      %vm1037 = vcmask 261120
      %v1039 = vsel %vm1037, %v1009, 0
      %v1042 = vsel %vm1037, %v1010, 0
      %v1045 = vsel %vm1037, %v1011, 0
      %v1048 = vsel %vm1037, %v1012, 0
      %v1051 = vsel %vm1037, %v1013, 0
      %v1054 = vsel %vm1037, %v1014, 0
      %v1057 = vsel %vm1037, %v1015, 0
      %v1060 = vsel %vm1037, %v1016, 0
      %1062 = vmatpush.bf16.msra.mxu0 0
      %1063 = vmatpush.bf16.msra.mxu0 0
      %1064 = vmatpush.bf16.msra.mxu0 0
      %1065 = vmatpush.bf16.msra.mxu0 0
      %1066 = vmatpush.bf16.msra.mxu0 0
      %1067 = vmatpush.bf16.msra.mxu0 0
      %1068 = vmatpush.bf16.msra.mxu0 %v1034
      %1069 = vmatpush.bf16.msra.mxu0 %v1033
      %1070 = vmatmul.bf16.gmra.mxu0 %v1039
      %v1071 = vpop.f32.mrf.mxu0
      %v1072 = vadd.f32 %v1023, %v1071
      %v1073 = vpop.f32.mrf.mxu0
      %v1074 = vadd.f32 %v1023, %v1073
      %1075 = vmatmul.bf16.gmra.mxu0 %v1042
      %v1076 = vpop.f32.mrf.mxu0
      %v1077 = vadd.f32 %v1023, %v1076
      %v1078 = vpop.f32.mrf.mxu0
      %v1079 = vadd.f32 %v1023, %v1078
      %1080 = vmatmul.bf16.gmra.mxu0 %v1045
      %v1081 = vpop.f32.mrf.mxu0
      %v1082 = vadd.f32 %v1023, %v1081
      %v1083 = vpop.f32.mrf.mxu0
      %v1084 = vadd.f32 %v1023, %v1083
      %1085 = vmatmul.bf16.gmra.mxu0 %v1048
      %v1086 = vpop.f32.mrf.mxu0
      %v1087 = vadd.f32 %v1023, %v1086
      %v1088 = vpop.f32.mrf.mxu0
      %v1089 = vadd.f32 %v1023, %v1088
      %1090 = vmatmul.bf16.gmra.mxu0 %v1051
      %v1091 = vpop.f32.mrf.mxu0
      %v1092 = vadd.f32 %v1023, %v1091
      %v1093 = vpop.f32.mrf.mxu0
      %v1094 = vadd.f32 %v1023, %v1093
      %1095 = vmatmul.bf16.gmra.mxu0 %v1054
      %v1096 = vpop.f32.mrf.mxu0
      %v1097 = vadd.f32 %v1023, %v1096
      %v1098 = vpop.f32.mrf.mxu0
      %v1099 = vadd.f32 %v1023, %v1098
      %1100 = vmatmul.bf16.gmra.mxu0 %v1057
      %v1101 = vpop.f32.mrf.mxu0
      %v1102 = vadd.f32 %v1023, %v1101
      %v1103 = vpop.f32.mrf.mxu0
      %v1104 = vadd.f32 %v1023, %v1103
      %1105 = vmatmul.bf16.gmra.mxu0 %v1060
      %v1106 = vpop.f32.mrf.mxu0
      %v1107 = vadd.f32 %v1023, %v1106
      %v1108 = vpop.f32.mrf.mxu0
      %v1109 = vadd.f32 %v1023, %v1108
      %1110 = vdwg.mxu0
      %v1111 = vmul.f32 %v1072, 0.5
      %v1112 = vmul.f32 %v1074, 0.5
      %v1113 = vmul.f32 %v1077, 0.5
      %v1114 = vmul.f32 %v1079, 0.5
      %v1115 = vmul.f32 %v1082, 0.5
      %v1116 = vmul.f32 %v1084, 0.5
      %v1117 = vmul.f32 %v1087, 0.5
      %v1118 = vmul.f32 %v1089, 0.5
      %v1119 = vmul.f32 %v1092, 0.5
      %v1120 = vmul.f32 %v1094, 0.5
      %v1121 = vmul.f32 %v1097, 0.5
      %v1122 = vmul.f32 %v1099, 0.5
      %v1123 = vmul.f32 %v1102, 0.5
      %v1124 = vmul.f32 %v1104, 0.5
      %v1125 = vmul.f32 %v1107, 0.5
      %v1126 = vmul.f32 %v1109, 0.5
      %v1127 = vmul.f32 %v1111, 1.442695
      %v1128 = vpow.pop %v1127
      %v1129 = vmul.f32 %v1112, 1.442695
      %v1130 = vpow.pop %v1129
      %v1131 = vmul.f32 %v1113, 1.442695
      %v1132 = vpow.pop %v1131
      %v1133 = vmul.f32 %v1114, 1.442695
      %v1134 = vpow.pop %v1133
      %v1135 = vmul.f32 %v1115, 1.442695
      %v1136 = vpow.pop %v1135
      %v1137 = vmul.f32 %v1116, 1.442695
      %v1138 = vpow.pop %v1137
      %v1139 = vmul.f32 %v1117, 1.442695
      %v1140 = vpow.pop %v1139
      %v1141 = vmul.f32 %v1118, 1.442695
      %v1142 = vpow.pop %v1141
      %v1143 = vmul.f32 %v1119, 1.442695
      %v1144 = vpow.pop %v1143
      %v1145 = vmul.f32 %v1120, 1.442695
      %v1146 = vpow.pop %v1145
      %v1147 = vmul.f32 %v1121, 1.442695
      %v1148 = vpow.pop %v1147
      %v1149 = vmul.f32 %v1122, 1.442695
      %v1150 = vpow.pop %v1149
      %v1151 = vmul.f32 %v1123, 1.442695
      %v1152 = vpow.pop %v1151
      %v1153 = vmul.f32 %v1124, 1.442695
      %v1154 = vpow.pop %v1153
      %v1155 = vmul.f32 %v1125, 1.442695
      %v1156 = vpow.pop %v1155
      %v1157 = vmul.f32 %v1126, 1.442695
      %v1158 = vpow.pop %v1157
      %v1159 = vld [vmem:[%s558] sm:$0xff]
      %v1160 = vld [vmem:[%s558 + $0x8] sm:$0xff]
      %v1161 = vld [vmem:[%s558 + $0x10] sm:$0xff]
      %v1162 = vld [vmem:[%s558 + $0x18] sm:$0xff]
      %v1163 = vld [vmem:[%s558 + $0x20] sm:$0xff]
      %v1164 = vld [vmem:[%s558 + $0x28] sm:$0xff]
      %v1165 = vld [vmem:[%s558 + $0x30] sm:$0xff]
      %v1166 = vld [vmem:[%s558 + $0x38] sm:$0xff]
      %v1167 = vld [vmem:[%s558 + $0x40] sm:$0xff]
      %v1168 = vld [vmem:[%s558 + $0x48] sm:$0xff]
      %v1169 = vld [vmem:[%s558 + $0x50] sm:$0xff]
      %v1170 = vld [vmem:[%s558 + $0x58] sm:$0xff]
      %v1171 = vld [vmem:[%s558 + $0x60] sm:$0xff]
      %v1172 = vld [vmem:[%s558 + $0x68] sm:$0xff]
      %v1173 = vld [vmem:[%s558 + $0x70] sm:$0xff]
      %v1174 = vld [vmem:[%s558 + $0x78] sm:$0xff]
      %1191 = vrot.lane.b32.xlu0 %v1159, 16
      %v1192 = vpop.permute.xlu0 %1191
      %1193 = vrot.lane.b32.xlu0 %v1160, 16
      %v1194 = vpop.permute.xlu0 %1193
      %1195 = vrot.lane.b32.xlu0 %v1161, 16
      %v1196 = vpop.permute.xlu0 %1195
      %1197 = vrot.lane.b32.xlu0 %v1162, 16
      %v1198 = vpop.permute.xlu0 %1197
      %1199 = vrot.lane.b32.xlu0 %v1163, 16
      %v1200 = vpop.permute.xlu0 %1199
      %1201 = vrot.lane.b32.xlu0 %v1164, 16
      %v1202 = vpop.permute.xlu0 %1201
      %1203 = vrot.lane.b32.xlu0 %v1165, 16
      %v1204 = vpop.permute.xlu0 %1203
      %1205 = vrot.lane.b32.xlu0 %v1166, 16
      %v1206 = vpop.permute.xlu0 %1205
      %1207 = vrot.lane.b32.xlu0 %v1167, 16
      %v1208 = vpop.permute.xlu0 %1207
      %1209 = vrot.lane.b32.xlu0 %v1168, 16
      %v1210 = vpop.permute.xlu0 %1209
      %1211 = vrot.lane.b32.xlu0 %v1169, 16
      %v1212 = vpop.permute.xlu0 %1211
      %1213 = vrot.lane.b32.xlu0 %v1170, 16
      %v1214 = vpop.permute.xlu0 %1213
      %1215 = vrot.lane.b32.xlu0 %v1171, 16
      %v1216 = vpop.permute.xlu0 %1215
      %1217 = vrot.lane.b32.xlu0 %v1172, 16
      %v1218 = vpop.permute.xlu0 %1217
      %1219 = vrot.lane.b32.xlu0 %v1173, 16
      %v1220 = vpop.permute.xlu0 %1219
      %1221 = vrot.lane.b32.xlu0 %v1174, 16
      %v1222 = vpop.permute.xlu0 %1221
      %v1239 = vmul.f32 %v1128, %v1192
      %v1240 = vmul.f32 %v1130, %v1194
      %v1241 = vmul.f32 %v1132, %v1196
      %v1242 = vmul.f32 %v1134, %v1198
      %v1243 = vmul.f32 %v1136, %v1200
      %v1244 = vmul.f32 %v1138, %v1202
      %v1245 = vmul.f32 %v1140, %v1204
      %v1246 = vmul.f32 %v1142, %v1206
      %v1247 = vmul.f32 %v1144, %v1208
      %v1248 = vmul.f32 %v1146, %v1210
      %v1249 = vmul.f32 %v1148, %v1212
      %v1250 = vmul.f32 %v1150, %v1214
      %v1251 = vmul.f32 %v1152, %v1216
      %v1252 = vmul.f32 %v1154, %v1218
      %v1253 = vmul.f32 %v1156, %v1220
      %v1254 = vmul.f32 %v1158, %v1222
      %1271 = vrot.lane.b32.xlu0 %v1239, 112
      %v1272 = vpop.permute.xlu0 %1271
      %1273 = vrot.lane.b32.xlu0 %v1240, 112
      %v1274 = vpop.permute.xlu0 %1273
      %1275 = vrot.lane.b32.xlu0 %v1241, 112
      %v1276 = vpop.permute.xlu0 %1275
      %1277 = vrot.lane.b32.xlu0 %v1242, 112
      %v1278 = vpop.permute.xlu0 %1277
      %1279 = vrot.lane.b32.xlu0 %v1243, 112
      %v1280 = vpop.permute.xlu0 %1279
      %1281 = vrot.lane.b32.xlu0 %v1244, 112
      %v1282 = vpop.permute.xlu0 %1281
      %1283 = vrot.lane.b32.xlu0 %v1245, 112
      %v1284 = vpop.permute.xlu0 %1283
      %1285 = vrot.lane.b32.xlu0 %v1246, 112
      %v1286 = vpop.permute.xlu0 %1285
      %1287 = vrot.lane.b32.xlu0 %v1247, 112
      %v1288 = vpop.permute.xlu0 %1287
      %1289 = vrot.lane.b32.xlu0 %v1248, 112
      %v1290 = vpop.permute.xlu0 %1289
      %1291 = vrot.lane.b32.xlu0 %v1249, 112
      %v1292 = vpop.permute.xlu0 %1291
      %1293 = vrot.lane.b32.xlu0 %v1250, 112
      %v1294 = vpop.permute.xlu0 %1293
      %1295 = vrot.lane.b32.xlu0 %v1251, 112
      %v1296 = vpop.permute.xlu0 %1295
      %1297 = vrot.lane.b32.xlu0 %v1252, 112
      %v1298 = vpop.permute.xlu0 %1297
      %1299 = vrot.lane.b32.xlu0 %v1253, 112
      %v1300 = vpop.permute.xlu0 %1299
      %1301 = vrot.lane.b32.xlu0 %v1254, 112
      %v1302 = vpop.permute.xlu0 %1301
      %v1319 = vadd.f32 %v1072, %v1272
      %v1320 = vadd.f32 %v1074, %v1274
      %v1321 = vadd.f32 %v1077, %v1276
      %v1322 = vadd.f32 %v1079, %v1278
      %v1323 = vadd.f32 %v1082, %v1280
      %v1324 = vadd.f32 %v1084, %v1282
      %v1325 = vadd.f32 %v1087, %v1284
      %v1326 = vadd.f32 %v1089, %v1286
      %v1327 = vadd.f32 %v1092, %v1288
      %v1328 = vadd.f32 %v1094, %v1290
      %v1329 = vadd.f32 %v1097, %v1292
      %v1330 = vadd.f32 %v1099, %v1294
      %v1331 = vadd.f32 %v1102, %v1296
      %v1332 = vadd.f32 %v1104, %v1298
      %v1333 = vadd.f32 %v1107, %v1300
      %v1334 = vadd.f32 %v1109, %v1302
      %v1335 = vpack.c.bf16 %v1320, %v1319
      %v1336 = vpack.c.bf16 %v1322, %v1321
      %v1337 = vpack.c.bf16 %v1324, %v1323
      %v1338 = vpack.c.bf16 %v1326, %v1325
      %v1339 = vpack.c.bf16 %v1328, %v1327
      %v1340 = vpack.c.bf16 %v1330, %v1329
      %v1341 = vpack.c.bf16 %v1332, %v1331
      %v1342 = vpack.c.bf16 %v1334, %v1333
      %v1343 = vld [vmem:[%s7] sm:$0xf]
      %v1344 = vld [vmem:[%s7 + $0x4] sm:$0xf]
      %v1345 = vld [vmem:[%s8] sm:$0x1]
      %v1347 = vperm.slane %v1345, 0
      %v1351 = vunpack.c.l.b16 %v1343
      %v1352 = vunpack.c.l.b16 %v1344
      %v1353 = vpack.c.b16 %v1352, %v1351
      %vm1355 = vcmask 130048
      %v1357 = vsel %vm1355, %v1335, 0
      %v1360 = vsel %vm1355, %v1336, 0
      %v1363 = vsel %vm1355, %v1337, 0
      %v1366 = vsel %vm1355, %v1338, 0
      %v1369 = vsel %vm1355, %v1339, 0
      %v1372 = vsel %vm1355, %v1340, 0
      %v1375 = vsel %vm1355, %v1341, 0
      %v1378 = vsel %vm1355, %v1342, 0
      %1380 = vmatpush.bf16.msra.mxu0 0
      %1381 = vmatpush.bf16.msra.mxu0 0
      %1382 = vmatpush.bf16.msra.mxu0 0
      %1383 = vmatpush.bf16.msra.mxu0 0
      %1384 = vmatpush.bf16.msra.mxu0 0
      %1385 = vmatpush.bf16.msra.mxu0 0
      %1386 = vmatpush.bf16.msra.mxu0 0
      %1387 = vmatpush.bf16.msra.mxu0 %v1353
      %1388 = vmatmul.bf16.gmra.mxu0 %v1357
      %v1389 = vpop.f32.mrf.mxu0
      %v1390 = vadd.f32 %v1347, %v1389
      %v1391 = vpop.f32.mrf.mxu0
      %v1392 = vadd.f32 %v1347, %v1391
      %1393 = vmatmul.bf16.gmra.mxu0 %v1360
      %v1394 = vpop.f32.mrf.mxu0
      %v1395 = vadd.f32 %v1347, %v1394
      %v1396 = vpop.f32.mrf.mxu0
      %v1397 = vadd.f32 %v1347, %v1396
      %1398 = vmatmul.bf16.gmra.mxu0 %v1363
      %v1399 = vpop.f32.mrf.mxu0
      %v1400 = vadd.f32 %v1347, %v1399
      %v1401 = vpop.f32.mrf.mxu0
      %v1402 = vadd.f32 %v1347, %v1401
      %1403 = vmatmul.bf16.gmra.mxu0 %v1366
      %v1404 = vpop.f32.mrf.mxu0
      %v1405 = vadd.f32 %v1347, %v1404
      %v1406 = vpop.f32.mrf.mxu0
      %v1407 = vadd.f32 %v1347, %v1406
      %1408 = vmatmul.bf16.gmra.mxu0 %v1369
      %v1409 = vpop.f32.mrf.mxu0
      %v1410 = vadd.f32 %v1347, %v1409
      %v1411 = vpop.f32.mrf.mxu0
      %v1412 = vadd.f32 %v1347, %v1411
      %1413 = vmatmul.bf16.gmra.mxu0 %v1372
      %v1414 = vpop.f32.mrf.mxu0
      %v1415 = vadd.f32 %v1347, %v1414
      %v1416 = vpop.f32.mrf.mxu0
      %v1417 = vadd.f32 %v1347, %v1416
      %1418 = vmatmul.bf16.gmra.mxu0 %v1375
      %v1419 = vpop.f32.mrf.mxu0
      %v1420 = vadd.f32 %v1347, %v1419
      %v1421 = vpop.f32.mrf.mxu0
      %v1422 = vadd.f32 %v1347, %v1421
      %1423 = vmatmul.bf16.gmra.mxu0 %v1378
      %v1424 = vpop.f32.mrf.mxu0
      %v1425 = vadd.f32 %v1347, %v1424
      %v1426 = vpop.f32.mrf.mxu0
      %v1427 = vadd.f32 %v1347, %v1426
      %1428 = vdwg.mxu0
      %v1429 = vmax.f32 %v1390, 0.0
      %v1430 = vmax.f32 %v1392, 0.0
      %v1431 = vmax.f32 %v1395, 0.0
      %v1432 = vmax.f32 %v1397, 0.0
      %v1433 = vmax.f32 %v1400, 0.0
      %v1434 = vmax.f32 %v1402, 0.0
      %v1435 = vmax.f32 %v1405, 0.0
      %v1436 = vmax.f32 %v1407, 0.0
      %v1437 = vmax.f32 %v1410, 0.0
      %v1438 = vmax.f32 %v1412, 0.0
      %v1439 = vmax.f32 %v1415, 0.0
      %v1440 = vmax.f32 %v1417, 0.0
      %v1441 = vmax.f32 %v1420, 0.0
      %v1442 = vmax.f32 %v1422, 0.0
      %v1443 = vmax.f32 %v1425, 0.0
      %v1444 = vmax.f32 %v1427, 0.0
      %v1445 = vpack.c.bf16 %v1430, %v1429
      %v1446 = vpack.c.bf16 %v1432, %v1431
      %v1447 = vpack.c.bf16 %v1434, %v1433
      %v1448 = vpack.c.bf16 %v1436, %v1435
      %v1449 = vpack.c.bf16 %v1438, %v1437
      %v1450 = vpack.c.bf16 %v1440, %v1439
      %v1451 = vpack.c.bf16 %v1442, %v1441
      %v1452 = vpack.c.bf16 %v1444, %v1443
      %v1453 = vld [vmem:[%s9] sm:$0xf]
      %v1454 = vld [vmem:[%s9 + $0x4] sm:$0xf]
      %v1455 = vld [vmem:[%s9 + $0x8] sm:$0xf]
      %v1456 = vld [vmem:[%s9 + $0xc] sm:$0xf]
      %v1457 = vld [vmem:[%s10] sm:$0x1]
      %v1459 = vperm.slane %v1457, 0
      %v1465 = vunpack.c.l.b16 %v1453
      %v1466 = vunpack.c.l.b16 %v1454
      %v1467 = vunpack.c.l.b16 %v1455
      %v1468 = vunpack.c.l.b16 %v1456
      %v1469 = vpack.c.b16 %v1466, %v1465
      %v1470 = vpack.c.b16 %v1468, %v1467
      %v1474 = vsel %vm1037, %v1445, 0
      %v1477 = vsel %vm1037, %v1446, 0
      %v1480 = vsel %vm1037, %v1447, 0
      %v1483 = vsel %vm1037, %v1448, 0
      %v1486 = vsel %vm1037, %v1449, 0
      %v1489 = vsel %vm1037, %v1450, 0
      %v1492 = vsel %vm1037, %v1451, 0
      %v1495 = vsel %vm1037, %v1452, 0
      %1497 = vmatpush.bf16.msra.mxu0 0
      %1498 = vmatpush.bf16.msra.mxu0 0
      %1499 = vmatpush.bf16.msra.mxu0 0
      %1500 = vmatpush.bf16.msra.mxu0 0
      %1501 = vmatpush.bf16.msra.mxu0 0
      %1502 = vmatpush.bf16.msra.mxu0 0
      %1503 = vmatpush.bf16.msra.mxu0 %v1470
      %1504 = vmatpush.bf16.msra.mxu0 %v1469
      %1505 = vmatmul.bf16.gmra.mxu0 %v1474
      %v1506 = vpop.f32.mrf.mxu0
      %v1507 = vadd.f32 %v1459, %v1506
      %v1508 = vpop.f32.mrf.mxu0
      %v1509 = vadd.f32 %v1459, %v1508
      %1510 = vmatmul.bf16.gmra.mxu0 %v1477
      %v1511 = vpop.f32.mrf.mxu0
      %v1512 = vadd.f32 %v1459, %v1511
      %v1513 = vpop.f32.mrf.mxu0
      %v1514 = vadd.f32 %v1459, %v1513
      %1515 = vmatmul.bf16.gmra.mxu0 %v1480
      %v1516 = vpop.f32.mrf.mxu0
      %v1517 = vadd.f32 %v1459, %v1516
      %v1518 = vpop.f32.mrf.mxu0
      %v1519 = vadd.f32 %v1459, %v1518
      %1520 = vmatmul.bf16.gmra.mxu0 %v1483
      %v1521 = vpop.f32.mrf.mxu0
      %v1522 = vadd.f32 %v1459, %v1521
      %v1523 = vpop.f32.mrf.mxu0
      %v1524 = vadd.f32 %v1459, %v1523
      %1525 = vmatmul.bf16.gmra.mxu0 %v1486
      %v1526 = vpop.f32.mrf.mxu0
      %v1527 = vadd.f32 %v1459, %v1526
      %v1528 = vpop.f32.mrf.mxu0
      %v1529 = vadd.f32 %v1459, %v1528
      %1530 = vmatmul.bf16.gmra.mxu0 %v1489
      %v1531 = vpop.f32.mrf.mxu0
      %v1532 = vadd.f32 %v1459, %v1531
      %v1533 = vpop.f32.mrf.mxu0
      %v1534 = vadd.f32 %v1459, %v1533
      %1535 = vmatmul.bf16.gmra.mxu0 %v1492
      %v1536 = vpop.f32.mrf.mxu0
      %v1537 = vadd.f32 %v1459, %v1536
      %v1538 = vpop.f32.mrf.mxu0
      %v1539 = vadd.f32 %v1459, %v1538
      %1540 = vmatmul.bf16.gmra.mxu0 %v1495
      %v1541 = vpop.f32.mrf.mxu0
      %v1542 = vadd.f32 %v1459, %v1541
      %v1543 = vpop.f32.mrf.mxu0
      %v1544 = vadd.f32 %v1459, %v1543
      %1545 = vdwg.mxu0
      %v1546 = vmax.f32 %v1507, 0.0
      %v1547 = vmax.f32 %v1509, 0.0
      %v1548 = vmax.f32 %v1512, 0.0
      %v1549 = vmax.f32 %v1514, 0.0
      %v1550 = vmax.f32 %v1517, 0.0
      %v1551 = vmax.f32 %v1519, 0.0
      %v1552 = vmax.f32 %v1522, 0.0
      %v1553 = vmax.f32 %v1524, 0.0
      %v1554 = vmax.f32 %v1527, 0.0
      %v1555 = vmax.f32 %v1529, 0.0
      %v1556 = vmax.f32 %v1532, 0.0
      %v1557 = vmax.f32 %v1534, 0.0
      %v1558 = vmax.f32 %v1537, 0.0
      %v1559 = vmax.f32 %v1539, 0.0
      %v1560 = vmax.f32 %v1542, 0.0
      %v1561 = vmax.f32 %v1544, 0.0
      %v1562 = vpack.c.bf16 %v1547, %v1546
      %v1563 = vpack.c.bf16 %v1549, %v1548
      %v1564 = vpack.c.bf16 %v1551, %v1550
      %v1565 = vpack.c.bf16 %v1553, %v1552
      %v1566 = vpack.c.bf16 %v1555, %v1554
      %v1567 = vpack.c.bf16 %v1557, %v1556
      %v1568 = vpack.c.bf16 %v1559, %v1558
      %v1569 = vpack.c.bf16 %v1561, %v1560
      %v1570 = vld [vmem:[%s11] sm:$0xff]
      %v1571 = vld [vmem:[%s11 + $0x8] sm:$0xff]
      %v1572 = vld [vmem:[%s11 + $0x10] sm:$0xff]
      %v1573 = vld [vmem:[%s11 + $0x18] sm:$0xff]
      %v1574 = vld [vmem:[%s11 + $0x20] sm:$0xff]
      %v1575 = vld [vmem:[%s11 + $0x28] sm:$0xff]
      %v1576 = vld [vmem:[%s11 + $0x30] sm:$0xff]
      %v1577 = vld [vmem:[%s11 + $0x38] sm:$0xff]
      %v1578 = vld [vmem:[%s12] sm:$0x3]
      %v1580 = vperm.slane %v1578, 0
      %v1581 = vperm.slane %v1578, 1
      %v1592 = vunpack.c.l.b16 %v1570
      %v1593 = vunpack.c.h.b16 %v1570
      %v1594 = vunpack.c.l.b16 %v1571
      %v1595 = vunpack.c.h.b16 %v1571
      %v1596 = vunpack.c.l.b16 %v1572
      %v1597 = vunpack.c.h.b16 %v1572
      %v1598 = vunpack.c.l.b16 %v1573
      %v1599 = vunpack.c.h.b16 %v1573
      %v1600 = vunpack.c.l.b16 %v1574
      %v1601 = vunpack.c.h.b16 %v1574
      %v1602 = vunpack.c.l.b16 %v1575
      %v1603 = vunpack.c.h.b16 %v1575
      %v1604 = vunpack.c.l.b16 %v1576
      %v1605 = vunpack.c.h.b16 %v1576
      %v1606 = vunpack.c.l.b16 %v1577
      %v1607 = vunpack.c.h.b16 %v1577
      %v1608 = vpack.c.b16 %v1594, %v1592
      %v1609 = vpack.c.b16 %v1595, %v1593
      %v1610 = vpack.c.b16 %v1598, %v1596
      %v1611 = vpack.c.b16 %v1599, %v1597
      %v1612 = vpack.c.b16 %v1602, %v1600
      %v1613 = vpack.c.b16 %v1603, %v1601
      %v1614 = vpack.c.b16 %v1606, %v1604
      %v1615 = vpack.c.b16 %v1607, %v1605
      %v1625 = vsel %vm919, %v1562, 0
      %v1628 = vsel %vm919, %v1563, 0
      %v1631 = vsel %vm919, %v1564, 0
      %v1634 = vsel %vm919, %v1565, 0
      %v1637 = vsel %vm919, %v1566, 0
      %v1640 = vsel %vm919, %v1567, 0
      %v1643 = vsel %vm919, %v1568, 0
      %v1646 = vsel %vm919, %v1569, 0
      %1648 = vmatpush.bf16.msra.mxu0 0
      %1649 = vmatpush.bf16.msra.mxu0 0
      %1650 = vmatpush.bf16.msra.mxu0 0
      %1651 = vmatpush.bf16.msra.mxu0 0
      %1652 = vmatpush.bf16.msra.mxu0 %v1614
      %1653 = vmatpush.bf16.msra.mxu0 %v1612
      %1654 = vmatpush.bf16.msra.mxu0 %v1610
      %1655 = vmatpush.bf16.msra.mxu0 %v1608
      %1656 = vmatmul.bf16.gmra.mxu0 %v1625
      %v1657 = vpop.f32.mrf.mxu0
      %v1658 = vadd.f32 %v1580, %v1657
      %v1659 = vpop.f32.mrf.mxu0
      %v1660 = vadd.f32 %v1580, %v1659
      %1661 = vmatmul.bf16.gmra.mxu0 %v1628
      %v1662 = vpop.f32.mrf.mxu0
      %v1663 = vadd.f32 %v1580, %v1662
      %v1664 = vpop.f32.mrf.mxu0
      %v1665 = vadd.f32 %v1580, %v1664
      %1666 = vmatmul.bf16.gmra.mxu0 %v1631
      %v1667 = vpop.f32.mrf.mxu0
      %v1668 = vadd.f32 %v1580, %v1667
      %v1669 = vpop.f32.mrf.mxu0
      %v1670 = vadd.f32 %v1580, %v1669
      %1671 = vmatmul.bf16.gmra.mxu0 %v1634
      %v1672 = vpop.f32.mrf.mxu0
      %v1673 = vadd.f32 %v1580, %v1672
      %v1674 = vpop.f32.mrf.mxu0
      %v1675 = vadd.f32 %v1580, %v1674
      %1676 = vmatmul.bf16.gmra.mxu0 %v1637
      %v1677 = vpop.f32.mrf.mxu0
      %v1678 = vadd.f32 %v1580, %v1677
      %v1679 = vpop.f32.mrf.mxu0
      %v1680 = vadd.f32 %v1580, %v1679
      %1681 = vmatmul.bf16.gmra.mxu0 %v1640
      %v1682 = vpop.f32.mrf.mxu0
      %v1683 = vadd.f32 %v1580, %v1682
      %v1684 = vpop.f32.mrf.mxu0
      %v1685 = vadd.f32 %v1580, %v1684
      %1686 = vmatmul.bf16.gmra.mxu0 %v1643
      %v1687 = vpop.f32.mrf.mxu0
      %v1688 = vadd.f32 %v1580, %v1687
      %v1689 = vpop.f32.mrf.mxu0
      %v1690 = vadd.f32 %v1580, %v1689
      %1691 = vmatmul.bf16.gmra.mxu0 %v1646
      %v1692 = vpop.f32.mrf.mxu0
      %v1693 = vadd.f32 %v1580, %v1692
      %v1694 = vpop.f32.mrf.mxu0
      %v1695 = vadd.f32 %v1580, %v1694
      %1696 = vdwg.mxu0
      %1697 = vmatpush.bf16.msra.mxu0 0
      %1698 = vmatpush.bf16.msra.mxu0 0
      %1699 = vmatpush.bf16.msra.mxu0 0
      %1700 = vmatpush.bf16.msra.mxu0 0
      %1701 = vmatpush.bf16.msra.mxu0 %v1615
      %1702 = vmatpush.bf16.msra.mxu0 %v1613
      %1703 = vmatpush.bf16.msra.mxu0 %v1611
      %1704 = vmatpush.bf16.msra.mxu0 %v1609
      %1705 = vmatmul.bf16.gmra.mxu0 %v1625
      %v1706 = vpop.f32.mrf.mxu0
      %v1707 = vadd.f32 %v1581, %v1706
      %v1708 = vpop.f32.mrf.mxu0
      %v1709 = vadd.f32 %v1581, %v1708
      %1710 = vmatmul.bf16.gmra.mxu0 %v1628
      %v1711 = vpop.f32.mrf.mxu0
      %v1712 = vadd.f32 %v1581, %v1711
      %v1713 = vpop.f32.mrf.mxu0
      %v1714 = vadd.f32 %v1581, %v1713
      %1715 = vmatmul.bf16.gmra.mxu0 %v1631
      %v1716 = vpop.f32.mrf.mxu0
      %v1717 = vadd.f32 %v1581, %v1716
      %v1718 = vpop.f32.mrf.mxu0
      %v1719 = vadd.f32 %v1581, %v1718
      %1720 = vmatmul.bf16.gmra.mxu0 %v1634
      %v1721 = vpop.f32.mrf.mxu0
      %v1722 = vadd.f32 %v1581, %v1721
      %v1723 = vpop.f32.mrf.mxu0
      %v1724 = vadd.f32 %v1581, %v1723
      %1725 = vmatmul.bf16.gmra.mxu0 %v1637
      %v1726 = vpop.f32.mrf.mxu0
      %v1727 = vadd.f32 %v1581, %v1726
      %v1728 = vpop.f32.mrf.mxu0
      %v1729 = vadd.f32 %v1581, %v1728
      %1730 = vmatmul.bf16.gmra.mxu0 %v1640
      %v1731 = vpop.f32.mrf.mxu0
      %v1732 = vadd.f32 %v1581, %v1731
      %v1733 = vpop.f32.mrf.mxu0
      %v1734 = vadd.f32 %v1581, %v1733
      %1735 = vmatmul.bf16.gmra.mxu0 %v1643
      %v1736 = vpop.f32.mrf.mxu0
      %v1737 = vadd.f32 %v1581, %v1736
      %v1738 = vpop.f32.mrf.mxu0
      %v1739 = vadd.f32 %v1581, %v1738
      %1740 = vmatmul.bf16.gmra.mxu0 %v1646
      %v1741 = vpop.f32.mrf.mxu0
      %v1742 = vadd.f32 %v1581, %v1741
      %v1743 = vpop.f32.mrf.mxu0
      %v1744 = vadd.f32 %v1581, %v1743
      %1745 = vdwg.mxu0
      %v1746 = vsub.f32 0.0, %v1658
      %v1747 = vsub.f32 0.0, %v1707
      %v1748 = vsub.f32 0.0, %v1660
      %v1749 = vsub.f32 0.0, %v1709
      %v1750 = vsub.f32 0.0, %v1663
      %v1751 = vsub.f32 0.0, %v1712
      %v1752 = vsub.f32 0.0, %v1665
      %v1753 = vsub.f32 0.0, %v1714
      %v1754 = vsub.f32 0.0, %v1668
      %v1755 = vsub.f32 0.0, %v1717
      %v1756 = vsub.f32 0.0, %v1670
      %v1757 = vsub.f32 0.0, %v1719
      %v1758 = vsub.f32 0.0, %v1673
      %v1759 = vsub.f32 0.0, %v1722
      %v1760 = vsub.f32 0.0, %v1675
      %v1761 = vsub.f32 0.0, %v1724
      %v1762 = vsub.f32 0.0, %v1678
      %v1763 = vsub.f32 0.0, %v1727
      %v1764 = vsub.f32 0.0, %v1680
      %v1765 = vsub.f32 0.0, %v1729
      %v1766 = vsub.f32 0.0, %v1683
      %v1767 = vsub.f32 0.0, %v1732
      %v1768 = vsub.f32 0.0, %v1685
      %v1769 = vsub.f32 0.0, %v1734
      %v1770 = vsub.f32 0.0, %v1688
      %v1771 = vsub.f32 0.0, %v1737
      %v1772 = vsub.f32 0.0, %v1690
      %v1773 = vsub.f32 0.0, %v1739
      %v1774 = vsub.f32 0.0, %v1693
      %v1775 = vsub.f32 0.0, %v1742
      %v1776 = vsub.f32 0.0, %v1695
      %v1777 = vsub.f32 0.0, %v1744
      %v1778 = vmul.f32 %v1746, 1.442695
      %v1779 = vpow.pop %v1778
      %v1780 = vmul.f32 %v1747, 1.442695
      %v1781 = vpow.pop %v1780
      %v1782 = vmul.f32 %v1748, 1.442695
      %v1783 = vpow.pop %v1782
      %v1784 = vmul.f32 %v1749, 1.442695
      %v1785 = vpow.pop %v1784
      %v1786 = vmul.f32 %v1750, 1.442695
      %v1787 = vpow.pop %v1786
      %v1788 = vmul.f32 %v1751, 1.442695
      %v1789 = vpow.pop %v1788
      %v1790 = vmul.f32 %v1752, 1.442695
      %v1791 = vpow.pop %v1790
      %v1792 = vmul.f32 %v1753, 1.442695
      %v1793 = vpow.pop %v1792
      %v1794 = vmul.f32 %v1754, 1.442695
      %v1795 = vpow.pop %v1794
      %v1796 = vmul.f32 %v1755, 1.442695
      %v1797 = vpow.pop %v1796
      %v1798 = vmul.f32 %v1756, 1.442695
      %v1799 = vpow.pop %v1798
      %v1800 = vmul.f32 %v1757, 1.442695
      %v1801 = vpow.pop %v1800
      %v1802 = vmul.f32 %v1758, 1.442695
      %v1803 = vpow.pop %v1802
      %v1804 = vmul.f32 %v1759, 1.442695
      %v1805 = vpow.pop %v1804
      %v1806 = vmul.f32 %v1760, 1.442695
      %v1807 = vpow.pop %v1806
      %v1808 = vmul.f32 %v1761, 1.442695
      %v1809 = vpow.pop %v1808
      %v1810 = vmul.f32 %v1762, 1.442695
      %v1811 = vpow.pop %v1810
      %v1812 = vmul.f32 %v1763, 1.442695
      %v1813 = vpow.pop %v1812
      %v1814 = vmul.f32 %v1764, 1.442695
      %v1815 = vpow.pop %v1814
      %v1816 = vmul.f32 %v1765, 1.442695
      %v1817 = vpow.pop %v1816
      %v1818 = vmul.f32 %v1766, 1.442695
      %v1819 = vpow.pop %v1818
      %v1820 = vmul.f32 %v1767, 1.442695
      %v1821 = vpow.pop %v1820
      %v1822 = vmul.f32 %v1768, 1.442695
      %v1823 = vpow.pop %v1822
      %v1824 = vmul.f32 %v1769, 1.442695
      %v1825 = vpow.pop %v1824
      %v1826 = vmul.f32 %v1770, 1.442695
      %v1827 = vpow.pop %v1826
      %v1828 = vmul.f32 %v1771, 1.442695
      %v1829 = vpow.pop %v1828
      %v1830 = vmul.f32 %v1772, 1.442695
      %v1831 = vpow.pop %v1830
      %v1832 = vmul.f32 %v1773, 1.442695
      %v1833 = vpow.pop %v1832
      %v1834 = vmul.f32 %v1774, 1.442695
      %v1835 = vpow.pop %v1834
      %v1836 = vmul.f32 %v1775, 1.442695
      %v1837 = vpow.pop %v1836
      %v1838 = vmul.f32 %v1776, 1.442695
      %v1839 = vpow.pop %v1838
      %v1840 = vmul.f32 %v1777, 1.442695
      %v1841 = vpow.pop %v1840
      %v1842 = vadd.f32 %v1779, 1.0
      %v1843 = vadd.f32 %v1781, 1.0
      %v1844 = vadd.f32 %v1783, 1.0
      %v1845 = vadd.f32 %v1785, 1.0
      %v1846 = vadd.f32 %v1787, 1.0
      %v1847 = vadd.f32 %v1789, 1.0
      %v1848 = vadd.f32 %v1791, 1.0
      %v1849 = vadd.f32 %v1793, 1.0
      %v1850 = vadd.f32 %v1795, 1.0
      %v1851 = vadd.f32 %v1797, 1.0
      %v1852 = vadd.f32 %v1799, 1.0
      %v1853 = vadd.f32 %v1801, 1.0
      %v1854 = vadd.f32 %v1803, 1.0
      %v1855 = vadd.f32 %v1805, 1.0
      %v1856 = vadd.f32 %v1807, 1.0
      %v1857 = vadd.f32 %v1809, 1.0
      %v1858 = vadd.f32 %v1811, 1.0
      %v1859 = vadd.f32 %v1813, 1.0
      %v1860 = vadd.f32 %v1815, 1.0
      %v1861 = vadd.f32 %v1817, 1.0
      %v1862 = vadd.f32 %v1819, 1.0
      %v1863 = vadd.f32 %v1821, 1.0
      %v1864 = vadd.f32 %v1823, 1.0
      %v1865 = vadd.f32 %v1825, 1.0
      %v1866 = vadd.f32 %v1827, 1.0
      %v1867 = vadd.f32 %v1829, 1.0
      %v1868 = vadd.f32 %v1831, 1.0
      %v1869 = vadd.f32 %v1833, 1.0
      %v1870 = vadd.f32 %v1835, 1.0
      %v1871 = vadd.f32 %v1837, 1.0
      %v1872 = vadd.f32 %v1839, 1.0
      %v1873 = vadd.f32 %v1841, 1.0
      %v1874 = vrcp.pop %v1842
      %v1875 = vrcp.pop %v1843
      %v1876 = vrcp.pop %v1844
      %v1877 = vrcp.pop %v1845
      %v1878 = vrcp.pop %v1846
      %v1879 = vrcp.pop %v1847
      %v1880 = vrcp.pop %v1848
      %v1881 = vrcp.pop %v1849
      %v1882 = vrcp.pop %v1850
      %v1883 = vrcp.pop %v1851
      %v1884 = vrcp.pop %v1852
      %v1885 = vrcp.pop %v1853
      %v1886 = vrcp.pop %v1854
      %v1887 = vrcp.pop %v1855
      %v1888 = vrcp.pop %v1856
      %v1889 = vrcp.pop %v1857
      %v1890 = vrcp.pop %v1858
      %v1891 = vrcp.pop %v1859
      %v1892 = vrcp.pop %v1860
      %v1893 = vrcp.pop %v1861
      %v1894 = vrcp.pop %v1862
      %v1895 = vrcp.pop %v1863
      %v1896 = vrcp.pop %v1864
      %v1897 = vrcp.pop %v1865
      %v1898 = vrcp.pop %v1866
      %v1899 = vrcp.pop %v1867
      %v1900 = vrcp.pop %v1868
      %v1901 = vrcp.pop %v1869
      %v1902 = vrcp.pop %v1870
      %v1903 = vrcp.pop %v1871
      %v1904 = vrcp.pop %v1872
      %v1905 = vrcp.pop %v1873
      %v1906 = vpack.c.bf16 %v1875, %v1874
      %v1907 = vpack.c.bf16 %v1877, %v1876
      %v1908 = vpack.c.bf16 %v1879, %v1878
      %v1909 = vpack.c.bf16 %v1881, %v1880
      %v1910 = vpack.c.bf16 %v1883, %v1882
      %v1911 = vpack.c.bf16 %v1885, %v1884
      %v1912 = vpack.c.bf16 %v1887, %v1886
      %v1913 = vpack.c.bf16 %v1889, %v1888
      %v1914 = vpack.c.bf16 %v1891, %v1890
      %v1915 = vpack.c.bf16 %v1893, %v1892
      %v1916 = vpack.c.bf16 %v1895, %v1894
      %v1917 = vpack.c.bf16 %v1897, %v1896
      %v1918 = vpack.c.bf16 %v1899, %v1898
      %v1919 = vpack.c.bf16 %v1901, %v1900
      %v1920 = vpack.c.bf16 %v1903, %v1902
      %v1921 = vpack.c.bf16 %v1905, %v1904
      %vm1922 = vcmask 1043456
      %vm1923 = vcmask 556036
      %vm1924 = vmor %vm1923, %vm1922
      %1925 = vst.msk [vmem:[%s565] sm:$0xff] %vm1924, %v1906
      %1926 = vst.msk [vmem:[%s565 + $0x8] sm:$0xff] %vm1924, %v1907
      %1927 = vst.msk [vmem:[%s565 + $0x10] sm:$0xff] %vm1924, %v1908
      %1928 = vst.msk [vmem:[%s565 + $0x18] sm:$0xff] %vm1924, %v1909
      %1929 = vst.msk [vmem:[%s565 + $0x20] sm:$0xff] %vm1924, %v1910
      %1930 = vst.msk [vmem:[%s565 + $0x28] sm:$0xff] %vm1924, %v1911
      %1931 = vst.msk [vmem:[%s565 + $0x30] sm:$0xff] %vm1924, %v1912
      %1932 = vst.msk [vmem:[%s565 + $0x38] sm:$0xff] %vm1924, %v1913
      %1933 = vst.msk [vmem:[%s565 + $0x40] sm:$0xff] %vm1924, %v1914
      %1934 = vst.msk [vmem:[%s565 + $0x48] sm:$0xff] %vm1924, %v1915
      %1935 = vst.msk [vmem:[%s565 + $0x50] sm:$0xff] %vm1924, %v1916
      %1936 = vst.msk [vmem:[%s565 + $0x58] sm:$0xff] %vm1924, %v1917
      %1937 = vst.msk [vmem:[%s565 + $0x60] sm:$0xff] %vm1924, %v1918
      %1938 = vst.msk [vmem:[%s565 + $0x68] sm:$0xff] %vm1924, %v1919
      %1939 = vst.msk [vmem:[%s565 + $0x70] sm:$0xff] %vm1924, %v1920
      %1940 = vst.msk [vmem:[%s565 + $0x78] sm:$0xff] %vm1924, %v1921
      %1941 = vst.msk [vmem:[%s571] sm:$0xff] %vm1355, %v1072
      %1942 = vst.msk [vmem:[%s571 + $0x8] sm:$0xff] %vm1355, %v1074
      %1943 = vst.msk [vmem:[%s571 + $0x10] sm:$0xff] %vm1355, %v1077
      %1944 = vst.msk [vmem:[%s571 + $0x18] sm:$0xff] %vm1355, %v1079
      %1945 = vst.msk [vmem:[%s571 + $0x20] sm:$0xff] %vm1355, %v1082
      %1946 = vst.msk [vmem:[%s571 + $0x28] sm:$0xff] %vm1355, %v1084
      %1947 = vst.msk [vmem:[%s571 + $0x30] sm:$0xff] %vm1355, %v1087
      %1948 = vst.msk [vmem:[%s571 + $0x38] sm:$0xff] %vm1355, %v1089
      %1949 = vst.msk [vmem:[%s571 + $0x40] sm:$0xff] %vm1355, %v1092
      %1950 = vst.msk [vmem:[%s571 + $0x48] sm:$0xff] %vm1355, %v1094
      %1951 = vst.msk [vmem:[%s571 + $0x50] sm:$0xff] %vm1355, %v1097
      %1952 = vst.msk [vmem:[%s571 + $0x58] sm:$0xff] %vm1355, %v1099
      %1953 = vst.msk [vmem:[%s571 + $0x60] sm:$0xff] %vm1355, %v1102
      %1954 = vst.msk [vmem:[%s571 + $0x68] sm:$0xff] %vm1355, %v1104
      %1955 = vst.msk [vmem:[%s571 + $0x70] sm:$0xff] %vm1355, %v1107
      %1956 = vst.msk [vmem:[%s571 + $0x78] sm:$0xff] %vm1355, %v1109
      %1973 = vrot.lane.b32.xlu0 %v1072, 112
      %v1974 = vpop.permute.xlu0 %1973
      %1975 = vrot.lane.b32.xlu0 %v1074, 112
      %v1976 = vpop.permute.xlu0 %1975
      %1977 = vrot.lane.b32.xlu0 %v1077, 112
      %v1978 = vpop.permute.xlu0 %1977
      %1979 = vrot.lane.b32.xlu0 %v1079, 112
      %v1980 = vpop.permute.xlu0 %1979
      %1981 = vrot.lane.b32.xlu0 %v1082, 112
      %v1982 = vpop.permute.xlu0 %1981
      %1983 = vrot.lane.b32.xlu0 %v1084, 112
      %v1984 = vpop.permute.xlu0 %1983
      %1985 = vrot.lane.b32.xlu0 %v1087, 112
      %v1986 = vpop.permute.xlu0 %1985
      %1987 = vrot.lane.b32.xlu0 %v1089, 112
      %v1988 = vpop.permute.xlu0 %1987
      %1989 = vrot.lane.b32.xlu0 %v1092, 112
      %v1990 = vpop.permute.xlu0 %1989
      %1991 = vrot.lane.b32.xlu0 %v1094, 112
      %v1992 = vpop.permute.xlu0 %1991
      %1993 = vrot.lane.b32.xlu0 %v1097, 112
      %v1994 = vpop.permute.xlu0 %1993
      %1995 = vrot.lane.b32.xlu0 %v1099, 112
      %v1996 = vpop.permute.xlu0 %1995
      %1997 = vrot.lane.b32.xlu0 %v1102, 112
      %v1998 = vpop.permute.xlu0 %1997
      %1999 = vrot.lane.b32.xlu0 %v1104, 112
      %v2000 = vpop.permute.xlu0 %1999
      %2001 = vrot.lane.b32.xlu0 %v1107, 112
      %v2002 = vpop.permute.xlu0 %2001
      %2003 = vrot.lane.b32.xlu0 %v1109, 112
      %v2004 = vpop.permute.xlu0 %2003
      %2021 = vst.msk [vmem:[%s577] sm:$0xff] %vm1355, %v1974
      %2022 = vst.msk [vmem:[%s577 + $0x8] sm:$0xff] %vm1355, %v1976
      %2023 = vst.msk [vmem:[%s577 + $0x10] sm:$0xff] %vm1355, %v1978
      %2024 = vst.msk [vmem:[%s577 + $0x18] sm:$0xff] %vm1355, %v1980
      %2025 = vst.msk [vmem:[%s577 + $0x20] sm:$0xff] %vm1355, %v1982
      %2026 = vst.msk [vmem:[%s577 + $0x28] sm:$0xff] %vm1355, %v1984
      %2027 = vst.msk [vmem:[%s577 + $0x30] sm:$0xff] %vm1355, %v1986
      %2028 = vst.msk [vmem:[%s577 + $0x38] sm:$0xff] %vm1355, %v1988
      %2029 = vst.msk [vmem:[%s577 + $0x40] sm:$0xff] %vm1355, %v1990
      %2030 = vst.msk [vmem:[%s577 + $0x48] sm:$0xff] %vm1355, %v1992
      %2031 = vst.msk [vmem:[%s577 + $0x50] sm:$0xff] %vm1355, %v1994
      %2032 = vst.msk [vmem:[%s577 + $0x58] sm:$0xff] %vm1355, %v1996
      %2033 = vst.msk [vmem:[%s577 + $0x60] sm:$0xff] %vm1355, %v1998
      %2034 = vst.msk [vmem:[%s577 + $0x68] sm:$0xff] %vm1355, %v2000
      %2035 = vst.msk [vmem:[%s577 + $0x70] sm:$0xff] %vm1355, %v2002
      %2036 = vst.msk [vmem:[%s577 + $0x78] sm:$0xff] %vm1355, %v2004
      %s2037 = smul.u32 16, %s28
      %p2038 = scmp.lt.s32.totalorder %s2037, 31
      %s2039 = scalar_select %p2038, %s2037, 31
      %s2040 = smul.addr %s2039, 2
      %s2041 = smul.addr %s2040, 4
      %s2042 = scalar_lea.vmem %s14, %s2041
      %s2043 = smul.u32 16, %s28
      %p2044 = scmp.lt.s32.totalorder %s2043, 31
      %s2045 = scalar_select %p2044, %s2043, 31
      %s2046 = smul.addr %s2045, 8
      %s2047 = scalar_lea.vmem %s15, %s2046
      %s2048 = smul.u32 16, %s28
      %p2049 = scmp.lt.s32.totalorder %s2048, 31
      %s2050 = scalar_select %p2049, %s2048, 31
      %s2051 = smul.addr %s2050, 8
      %s2052 = scalar_lea.vmem %s16, %s2051
      // Predicated region
      $region77: #{var_aenc_forward.1} parent=75 // pred_check
        %p2053 = pneg %p350
      $region78: #{var_aenc_forward.1} parent=75 // pred_check_branch
        %2055 = sbr.rel (%p2053) target = $region80
      $region79: #{var_aenc_forward.1} parent=75 // pred_region
        %s2056 = smul.u32 16, %s28
      $region80: #{var_aenc_forward.1} parent=75 // pred_fallthru
        _
      // Predicated region
      $region81: #{var_aenc_forward.1} parent=75 // pred_check
        %p2057 = pneg %p376
      $region82: #{var_aenc_forward.1} parent=75 // pred_check_branch
        %2059 = sbr.rel (%p2057) target = $region84
      $region83: #{var_aenc_forward.1} parent=75 // pred_region
        %s2060 = smul.u32 16, %s28
      $region84: #{var_aenc_forward.1} parent=75 // pred_fallthru
        _
      // Predicated region
      $region85: #{var_aenc_forward.1} parent=75 // pred_check
        %p2061 = pneg %p402
      $region86: #{var_aenc_forward.1} parent=75 // pred_check_branch
        %2063 = sbr.rel (%p2061) target = $region88
      $region87: #{var_aenc_forward.1} parent=75 // pred_region
        %s2064 = smul.u32 16, %s28
      $region88: #{var_aenc_forward.1} parent=75 // pred_fallthru
        _
    $region76: #{var_aenc_forward.1} parent=5 // pred_fallthru
      _
    %p2065 = scmp.le.s32.totalorder 2, %s23
    // Predicated region
    $region89: #{var_aenc_forward.1} parent=5 // pred_check
      %p2066 = pneg %p2065
    $region90: #{var_aenc_forward.1} parent=5 // pred_check_branch
      %2068 = sbr.rel (%p2066) target = $region92
    $region91: #{var_aenc_forward.1} parent=5 // pred_region
      %s2069 = ssub.s32 %s23, 2
      // Predicated region
      $region93: #{var_aenc_forward.1} parent=91 // pred_check
        %p2070 = pneg %p356
      $region94: #{var_aenc_forward.1} parent=91 // pred_check_branch
        %2072 = sbr.rel (%p2070) target = $region96
      $region95: #{var_aenc_forward.1} parent=91 // pred_region
        %s2073 = smul.u32 16, %s29
        %p2074 = scmp.lt.s32.totalorder %s2073, 31
        %s2075 = scalar_select %p2074, %s2073, 31
        %s2076 = smul.addr %s2075, 2
        %s2077 = smul.addr %s2076, 4
        %s2078 = scalar_lea.vmem %s14, %s2077
      $region96: #{var_aenc_forward.1} parent=91 // pred_fallthru
        _
      // Predicated region
      $region97: #{var_aenc_forward.1} parent=91 // pred_check
        %p2079 = pneg %p382
      $region98: #{var_aenc_forward.1} parent=91 // pred_check_branch
        %2081 = sbr.rel (%p2079) target = $region100
      $region99: #{var_aenc_forward.1} parent=91 // pred_region
        %s2082 = smul.u32 16, %s29
        %p2083 = scmp.lt.s32.totalorder %s2082, 31
        %s2084 = scalar_select %p2083, %s2082, 31
        %s2085 = smul.addr %s2084, 8
        %s2086 = scalar_lea.vmem %s15, %s2085
      $region100: #{var_aenc_forward.1} parent=91 // pred_fallthru
        _
      // Predicated region
      $region101: #{var_aenc_forward.1} parent=91 // pred_check
        %p2087 = pneg %p408
      $region102: #{var_aenc_forward.1} parent=91 // pred_check_branch
        %2089 = sbr.rel (%p2087) target = $region104
      $region103: #{var_aenc_forward.1} parent=91 // pred_region
        %s2090 = smul.u32 16, %s29
        %p2091 = scmp.lt.s32.totalorder %s2090, 31
        %s2092 = scalar_select %p2091, %s2090, 31
        %s2093 = smul.addr %s2092, 8
        %s2094 = scalar_lea.vmem %s16, %s2093
      $region104: #{var_aenc_forward.1} parent=91 // pred_fallthru
        _
    $region92: #{var_aenc_forward.1} parent=5 // pred_fallthru
      _
  $region6: #{var_aenc_forward.1} parent=0 // loop_footer
    %s27 = sadd.s32 1, %s23
  $region7: #{var_aenc_forward.1} parent=0 // loop_footer_branch
    %22 = sbr.rel target = $region3
  $region8: #{var_aenc_forward.1} parent=0 // loop_exit
    _

</llo_original>
